<compile_context>
chip_gen: v7x
topology: tpu7x:2x2x1
jax: 0.10.0
libtpu: 0.0.40
codegen_flags: <defaults>
</compile_context>

<pallas_src>
import functools
import math

import jax
import jax.numpy as jnp
from jax import lax
from jax.experimental import pallas as pl
from jax.experimental.pallas import tpu as pltpu


# ------------------------------ module config --------------------------------

DIM = 16
NUM_HEADS = 2
HEAD_DIM = DIM // NUM_HEADS
WINDOW_SIZE = 0.1
QUANT_SIZE = 0.02
QUANT_GRID_LENGTH = int((2 * WINDOW_SIZE + 0.0001) // QUANT_SIZE)   # = 10
MLP_RATIO = 4.0
MLP_HIDDEN = int(DIM * MLP_RATIO)
SCALE = HEAD_DIM ** (-0.5)
LN_EPS = 1e-5

_PARALLEL = pltpu.CompilerParams(dimension_semantics=("parallel",))
# Attention kernel streams (tile, n_max, D) value blocks; raise the scoped-VMEM limit
# so production n_max does not force a tile shrink on v5e (16 MiB default).
_ATTN_PARAMS = pltpu.CompilerParams(dimension_semantics=("parallel",),
                                    vmem_limit_bytes=32 * 1024 * 1024)


def _round_up(x, m):
    return (x + m - 1) // m * m


def _row_blocks(n, max_tile):
    """Pick (tile, padded_n): 8-aligned tile <= max_tile, padding bounded by
    ~8 rows per block (instead of padding up to a full fixed-size tile)."""
    np8 = _round_up(n, 8)
    if np8 <= max_tile:
        return np8, np8
    nblk = -(-np8 // max_tile)
    tile = _round_up(-(-np8 // nblk), 8)
    return tile, tile * nblk


# ----------------------------- Pallas kernels --------------------------------

def _ln_linear_kernel(x_ref, g_ref, b_ref, w_ref, wb_ref, o_ref, *, eps):
    """LayerNorm followed by Linear, fused (used for norm1 + qkv)."""
    x = x_ref[...]
    mean = jnp.mean(x, axis=-1, keepdims=True)
    xc = x - mean
    var = jnp.mean(xc * xc, axis=-1, keepdims=True)
    xn = xc * lax.rsqrt(var + eps) * g_ref[...] + b_ref[...]
    o_ref[...] = (jnp.dot(xn, w_ref[...], preferred_element_type=jnp.float32)
                  + wb_ref[...])


def ln_linear(x, gamma, beta, w, b, *, eps=LN_EPS, max_tile=2048):
    N, K = x.shape
    F = w.shape[1]
    tile, Np = _row_blocks(N, max_tile)
    if Np != N:
        x = jnp.pad(x, ((0, Np - N), (0, 0)))
    out = pl.pallas_call(
        functools.partial(_ln_linear_kernel, eps=eps),
        out_shape=jax.ShapeDtypeStruct((Np, F), jnp.float32),
        grid=(Np // tile,),
        in_specs=[pl.BlockSpec((tile, K), lambda i: (i, 0)),
                  pl.BlockSpec((1, K), lambda i: (0, 0)),
                  pl.BlockSpec((1, K), lambda i: (0, 0)),
                  pl.BlockSpec((K, F), lambda i: (0, 0)),
                  pl.BlockSpec((1, F), lambda i: (0, 0))],
        out_specs=pl.BlockSpec((tile, F), lambda i: (i, 0)),
        compiler_params=_PARALLEL,
    )(x, gamma.reshape(1, K), beta.reshape(1, K), w, b.reshape(1, F))
    return out[:N]


def _softmax_pv_kernel(logit_ref, v_ref, cnt_ref, o_ref):
    """Count-masked softmax over neighbor slots + weighted value aggregation.

    logits[r, j] already contain q·k plus the relative-position bias (precomputed
    per pair in the glue == pointops.attention_step1_v2 + dot_prod_with_idx_v3);
    this kernel is scatter_softmax + pointops.attention_step2 fused.
    """
    logits = logit_ref[...]            # (T, J)
    v = v_ref[...]                     # (T, J, D)
    cnt = cnt_ref[...]                 # (T, 1) int32 — valid neighbors per row

    T, J = logits.shape
    valid = lax.broadcasted_iota(jnp.int32, (T, J), 1) < cnt

    logits = jnp.where(valid, logits, -1e30)
    amax = jnp.max(logits, axis=-1, keepdims=True)
    p = jnp.where(valid, jnp.exp(logits - amax), 0.0)
    denom = jnp.sum(p, axis=-1, keepdims=True)
    denom = jnp.where(denom > 0.0, denom, 1.0)     # guard empty (padded) rows
    p = p * pl.reciprocal(denom, approx=True)      # EUP slot, frees the VALU

    o_ref[...] = jnp.sum(p[:, :, None] * v, axis=1)                 # (T, D)


def window_softmax_pv(logits_d, v_d, cnt, *, tile):
    Rp, J, D = v_d.shape
    assert Rp % tile == 0
    return pl.pallas_call(
        _softmax_pv_kernel,
        out_shape=jax.ShapeDtypeStruct((Rp, D), jnp.float32),
        grid=(Rp // tile,),
        in_specs=[pl.BlockSpec((tile, J), lambda i: (i, 0)),
                  pl.BlockSpec((tile, J, D), lambda i: (i, 0, 0)),
                  pl.BlockSpec((tile, 1), lambda i: (i, 0))],
        out_specs=pl.BlockSpec((tile, D), lambda i: (i, 0)),
        compiler_params=_ATTN_PARAMS,
    )(logits_d, v_d, cnt)


def _proj_mlp_kernel(x_ref, sc_ref, pw_ref, pb_ref, g2_ref, bt2_ref,
                     w1_ref, b1_ref, w2_ref, fb2_ref, o_ref, *, eps):
    """proj + residual + LayerNorm(norm2) + fc1 + GELU + fc2 + residual, fused."""
    x = x_ref[...]
    feats2 = (sc_ref[...]
              + jnp.dot(x, pw_ref[...], preferred_element_type=jnp.float32)
              + pb_ref[...])
    mean = jnp.mean(feats2, axis=-1, keepdims=True)
    yc = feats2 - mean
    var = jnp.mean(yc * yc, axis=-1, keepdims=True)
    y = yc * lax.rsqrt(var + eps) * g2_ref[...] + bt2_ref[...]
    h = jnp.dot(y, w1_ref[...], preferred_element_type=jnp.float32) + b1_ref[...]
    # exact GELU (erf form), matching torch.nn.GELU() default
    h = 0.5 * h * (1.0 + lax.erf(h * (1.0 / math.sqrt(2.0))))
    o_ref[...] = (feats2
                  + jnp.dot(h, w2_ref[...], preferred_element_type=jnp.float32)
                  + fb2_ref[...])


def proj_mlp(x, short_cut, params, *, eps=LN_EPS, max_tile=2048):
    N, C = x.shape
    Hd = params["fc1_w"].shape[1]
    tile, Np = _row_blocks(N, max_tile)
    if Np != N:
        x = jnp.pad(x, ((0, Np - N), (0, 0)))
        short_cut = jnp.pad(short_cut, ((0, Np - N), (0, 0)))
    out = pl.pallas_call(
        functools.partial(_proj_mlp_kernel, eps=eps),
        out_shape=jax.ShapeDtypeStruct((Np, C), jnp.float32),
        grid=(Np // tile,),
        in_specs=[pl.BlockSpec((tile, C), lambda i: (i, 0)),   # attention output
                  pl.BlockSpec((tile, C), lambda i: (i, 0)),   # short_cut
                  pl.BlockSpec((C, C), lambda i: (0, 0)),      # proj_w
                  pl.BlockSpec((1, C), lambda i: (0, 0)),      # proj_b
                  pl.BlockSpec((1, C), lambda i: (0, 0)),      # ln2_g
                  pl.BlockSpec((1, C), lambda i: (0, 0)),      # ln2_b
                  pl.BlockSpec((C, Hd), lambda i: (0, 0)),     # fc1_w
                  pl.BlockSpec((1, Hd), lambda i: (0, 0)),     # fc1_b
                  pl.BlockSpec((Hd, C), lambda i: (0, 0)),     # fc2_w
                  pl.BlockSpec((1, C), lambda i: (0, 0))],     # fc2_b
        out_specs=pl.BlockSpec((tile, C), lambda i: (i, 0)),
        compiler_params=_PARALLEL,
    )(x, short_cut,
      params["proj_w"], params["proj_b"].reshape(1, C),
      params["ln2_g"].reshape(1, C), params["ln2_b"].reshape(1, C),
      params["fc1_w"], params["fc1_b"].reshape(1, Hd),
      params["fc2_w"], params["fc2_b"].reshape(1, C))
    return out[:N]


# ------------------------------ parameters ------------------------------------

def init_params(key):
    ks = jax.random.split(key, 8)
    nrm = lambda k, s: (0.02 * jax.random.normal(k, s)).astype(jnp.float32)
    return {
        "ln1_g": jnp.ones((DIM,), jnp.float32),
        "ln1_b": jnp.zeros((DIM,), jnp.float32),
        "qkv_w": nrm(ks[0], (DIM, 3 * DIM)),
        "qkv_b": jnp.zeros((3 * DIM,), jnp.float32),
        "proj_w": nrm(ks[1], (DIM, DIM)),
        "proj_b": jnp.zeros((DIM,), jnp.float32),
        # relative_pos_{query,key}_table: (2*quant_grid_length, num_heads, head_dim, 3)
        "table_q": nrm(ks[2], (2 * QUANT_GRID_LENGTH, NUM_HEADS, HEAD_DIM, 3)),
        "table_k": nrm(ks[3], (2 * QUANT_GRID_LENGTH, NUM_HEADS, HEAD_DIM, 3)),
        "ln2_g": jnp.ones((DIM,), jnp.float32),
        "ln2_b": jnp.zeros((DIM,), jnp.float32),
        "fc1_w": nrm(ks[4], (DIM, MLP_HIDDEN)),
        "fc1_b": jnp.zeros((MLP_HIDDEN,), jnp.float32),
        "fc2_w": nrm(ks[5], (MLP_HIDDEN, DIM)),
        "fc2_b": jnp.zeros((DIM,), jnp.float32),
    }


# ------------------------------ forward pass ---------------------------------

def swin_block_forward(params, feats, xyz, index_0, index_1, index_0_offsets, n_max):
    N, C = feats.shape
    M = index_0.shape[0]
    H, D = NUM_HEADS, HEAD_DIM

    short_cut = feats

    # ---- norm1 fused with qkv projection (Pallas kernel 1); qk scale folded into
    #      the q columns of the weight/bias so no extra elementwise pass over qkv ----
    col_scale = jnp.concatenate([jnp.full((C,), SCALE, jnp.float32),
                                 jnp.ones((2 * C,), jnp.float32)])
    qkv = ln_linear(feats, params["ln1_g"], params["ln1_b"],
                    params["qkv_w"] * col_scale[None, :],
                    params["qkv_b"] * col_scale)                   # (N, 3C)
    qkv = qkv.reshape(N, 3, H, D)
    q, k, v = qkv[:, 0], qkv[:, 1], qkv[:, 2]

    # ---- JAX glue: pointops-style pair gathers + per-pair logits --------------
    # Precondition (as produced by pointops): index_0 is sorted and contiguous per
    # query, so slot = position within the query's neighbor list.
    # TODO(synk): move the pair gather in-kernel (PrefetchScalarGridSpec + manual
    # pltpu.make_async_copy row gathers) for production point counts.
    q_i0 = q[index_0]                                              # (M, H, D)
    k_i1 = k[index_1]
    v_i1 = v[index_1]

    rel = xyz[index_0] - xyz[index_1]
    rel = jnp.round(rel * 100000.0) / 100000.0
    rel_idx = jnp.floor((rel + 2 * WINDOW_SIZE - 0.0001) / QUANT_SIZE).astype(jnp.int32)
    rel_idx = jnp.clip(rel_idx, 0, 2 * QUANT_GRID_LENGTH - 1)      # explicit clamp

    tq_sum = sum(params["table_q"][rel_idx[:, c], :, :, c] for c in range(3))
    tk_sum = sum(params["table_k"][rel_idx[:, c], :, :, c] for c in range(3))

    # Per-pair logit = q·k + q·tq_sum + k·tk_sum.  q_i0/k_i1 are already resident for
    # the bias math, so fusing q·k here removes the packed K stream from the kernel.
    attn_pair = jnp.sum(q_i0 * (k_i1 + tq_sum) + k_i1 * tk_sum, axis=-1)   # (M, H)

    # ---- dense per-query packing directly into the kernel layout --------------
    R = N * H
    tile_r, Rp = _row_blocks(R, max_tile=512)
    assert Rp % H == 0
    Np = Rp // H                                                   # padded query rows

    counts = (index_0_offsets[1:] - index_0_offsets[:-1]).astype(jnp.int32)    # (N,)
    slot = jnp.arange(M, dtype=jnp.int32) - index_0_offsets[index_0]           # (M,)

    # (index_0, slot) destination pairs are sorted & unique under the precondition.
    v_d = (jnp.zeros((Np, H, n_max, D), jnp.float32)
           .at[index_0, :, slot]
           .set(v_i1, indices_are_sorted=True, unique_indices=True)
           .reshape(Rp, n_max, D))
    logits_d = (jnp.zeros((Np, H, n_max), jnp.float32)
                .at[index_0, :, slot]
                .set(attn_pair, indices_are_sorted=True, unique_indices=True)
                .reshape(Rp, n_max))
    counts_p = jnp.pad(counts, (0, Np - N))                        # padded rows: count 0
    cnt_flat = jnp.broadcast_to(counts_p[:, None], (Np, H)).reshape(Rp, 1)

    # ---- fused masked softmax + P@V (Pallas kernel 2) --------------------------
    attn_out = window_softmax_pv(logits_d, v_d, cnt_flat, tile=tile_r)[:R]     # (R, D)
    x = attn_out.reshape(N, C)

    # ---- proj + residual + norm2 + MLP + residual (Pallas kernel 3) ------------
    return proj_mlp(x, short_cut, params)


# --------------------------- pure-JAX reference -------------------------------

def ref_forward(params, feats, xyz, index_0, index_1, index_0_offsets, n_max):
    N, C = feats.shape
    H, D = NUM_HEADS, HEAD_DIM

    def ln(x, g, b):
        mean = jnp.mean(x, axis=-1, keepdims=True)
        var = jnp.mean((x - mean) ** 2, axis=-1, keepdims=True)
        return (x - mean) / jnp.sqrt(var + LN_EPS) * g + b

    short_cut = feats
    x = ln(feats, params["ln1_g"], params["ln1_b"])
    qkv = (x @ params["qkv_w"] + params["qkv_b"]).reshape(N, 3, H, D)
    q = qkv[:, 0] * SCALE
    k = qkv[:, 1]
    v = qkv[:, 2]

    attn = jnp.sum(q[index_0] * k[index_1], axis=-1)               # (M, H)
    rel = xyz[index_0] - xyz[index_1]
    rel = jnp.round(rel * 100000.0) / 100000.0
    rel_idx = jnp.floor((rel + 2 * WINDOW_SIZE - 0.0001) / QUANT_SIZE).astype(jnp.int32)
    rel_idx = jnp.clip(rel_idx, 0, 2 * QUANT_GRID_LENGTH - 1)
    tq_sum = sum(params["table_q"][rel_idx[:, c], :, :, c] for c in range(3))
    tk_sum = sum(params["table_k"][rel_idx[:, c], :, :, c] for c in range(3))
    attn = attn + jnp.sum(q[index_0] * tq_sum + k[index_1] * tk_sum, axis=-1)

    amax = jax.ops.segment_max(attn, index_0, num_segments=N)
    e = jnp.exp(attn - amax[index_0])
    denom = jax.ops.segment_sum(e, index_0, num_segments=N)
    p = e / denom[index_0]
    out = jax.ops.segment_sum(p[:, :, None] * v[index_1], index_0, num_segments=N)
    x = out.reshape(N, C) @ params["proj_w"] + params["proj_b"]

    feats2 = short_cut + x
    y = ln(feats2, params["ln2_g"], params["ln2_b"])
    h = jax.nn.gelu(y @ params["fc1_w"] + params["fc1_b"], approximate=False)
    return feats2 + h @ params["fc2_w"] + params["fc2_b"]


# ---------------------------------- main --------------------------------------

if __name__ == "__main__":
    key = jax.random.PRNGKey(0)
    k_par, k_feat, k_xyz = jax.random.split(key, 3)

    params = init_params(k_par)

    # synthetic point cloud: variable-size windows, all-pairs within each window
    sizes = [5, 8, 3, 7, 8]          # exercises masking (counts < n_max) and row padding
    N = sum(sizes)                   # 31
    n_max = max(sizes)               # 8

    index_0_list, index_1_list, counts_list = [], [], []
    start = 0
    for s in sizes:
        for i in range(s):
            counts_list.append(s)
            for j in range(s):
                index_0_list.append(start + i)
                index_1_list.append(start + j)
        start += s
    index_0 = jnp.asarray(index_0_list, dtype=jnp.int32)           # (M,), sorted
    index_1 = jnp.asarray(index_1_list, dtype=jnp.int32)
    counts = jnp.asarray(counts_list, dtype=jnp.int32)             # (N,)
    index_0_offsets = jnp.concatenate(
        [jnp.zeros((1,), jnp.int32), jnp.cumsum(counts).astype(jnp.int32)])    # (N+1,)

    feats = jax.random.normal(k_feat, (N, DIM), jnp.float32)
    xyz = jax.random.uniform(k_xyz, (N, 3), jnp.float32, 0.0, 0.099)

    fwd = jax.jit(functools.partial(swin_block_forward, n_max=n_max))
    out = fwd(params, feats, xyz, index_0, index_1, index_0_offsets)
    out = jax.block_until_ready(out)

    ref = ref_forward(params, feats, xyz, index_0, index_1, index_0_offsets, n_max)
    assert out.shape == (N, DIM)
    assert jnp.allclose(out, ref, atol=5e-3, rtol=5e-3), "mismatch vs reference"

    print("KERNEL_OK")
</pallas_src>

<mosaic_0001>
module attributes {stable_mosaic.version = 11 : i64} {
  func.func @_ln_linear_kernel(%arg0: i32, %arg1: memref<32x16xf32, #tpu.memory_space<vmem>>, %arg2: memref<1x16xf32, #tpu.memory_space<vmem>>, %arg3: memref<1x16xf32, #tpu.memory_space<vmem>>, %arg4: memref<16x48xf32, #tpu.memory_space<vmem>>, %arg5: memref<1x48xf32, #tpu.memory_space<vmem>>, %arg6: memref<32x48xf32, #tpu.memory_space<vmem>>) attributes {dimension_semantics = [#tpu.dimension_semantics<parallel>], iteration_bounds = array<i64: 1>, scalar_prefetch = 0 : i64, scratch_operands = 0 : i64, tpu.core_type = #tpu.core_type<tc>, window_params = [{transform_indices = @transform_0, window_bounds = array<i64: 32, 16>}, {pipeline_mode = #tpu.pipeline_mode<synchronous>, transform_indices = @transform_1, window_bounds = array<i64: 1, 16>}, {pipeline_mode = #tpu.pipeline_mode<synchronous>, transform_indices = @transform_2, window_bounds = array<i64: 1, 16>}, {pipeline_mode = #tpu.pipeline_mode<synchronous>, transform_indices = @transform_3, window_bounds = array<i64: 16, 48>}, {pipeline_mode = #tpu.pipeline_mode<synchronous>, transform_indices = @transform_4, window_bounds = array<i64: 1, 48>}, {transform_indices = @transform_5, window_bounds = array<i64: 32, 48>}]} {
    %c0 = arith.constant 0 : index
    %c0_0 = arith.constant 0 : index
    %0 = vector.load %arg1[%c0, %c0_0] : memref<32x16xf32, #tpu.memory_space<vmem>>, vector<32x16xf32>
    %cst = arith.constant dense<0.000000e+00> : vector<32xf32>
    %1 = vector.multi_reduction <add>, %0, %cst [1] : vector<32x16xf32> to vector<32xf32>
    %2 = vector.shape_cast %1 : vector<32xf32> to vector<32x1xf32>
    %cst_1 = arith.constant 1.600000e+01 : f32
    %3 = vector.broadcast %cst_1 : f32 to vector<32x1xf32>
    %4 = arith.divf %2, %3 : vector<32x1xf32>
    %5 = vector.broadcast %4 : vector<32x1xf32> to vector<32x16xf32>
    %6 = arith.subf %0, %5 : vector<32x16xf32>
    %7 = arith.mulf %6, %6 : vector<32x16xf32>
    %cst_2 = arith.constant dense<0.000000e+00> : vector<32xf32>
    %8 = vector.multi_reduction <add>, %7, %cst_2 [1] : vector<32x16xf32> to vector<32xf32>
    %9 = vector.shape_cast %8 : vector<32xf32> to vector<32x1xf32>
    %cst_3 = arith.constant 1.600000e+01 : f32
    %10 = vector.broadcast %cst_3 : f32 to vector<32x1xf32>
    %11 = arith.divf %9, %10 : vector<32x1xf32>
    %cst_4 = arith.constant 9.99999974E-6 : f32
    %12 = vector.broadcast %cst_4 : f32 to vector<32x1xf32>
    %13 = arith.addf %11, %12 : vector<32x1xf32>
    %14 = math.rsqrt %13 : vector<32x1xf32>
    %15 = vector.broadcast %14 : vector<32x1xf32> to vector<32x16xf32>
    %16 = arith.mulf %6, %15 : vector<32x16xf32>
    %c0_5 = arith.constant 0 : index
    %c0_6 = arith.constant 0 : index
    %17 = vector.load %arg2[%c0_5, %c0_6] : memref<1x16xf32, #tpu.memory_space<vmem>>, vector<1x16xf32>
    %18 = vector.broadcast %17 : vector<1x16xf32> to vector<32x16xf32>
    %19 = arith.mulf %16, %18 : vector<32x16xf32>
    %c0_7 = arith.constant 0 : index
    %c0_8 = arith.constant 0 : index
    %20 = vector.load %arg3[%c0_7, %c0_8] : memref<1x16xf32, #tpu.memory_space<vmem>>, vector<1x16xf32>
    %21 = vector.broadcast %20 : vector<1x16xf32> to vector<32x16xf32>
    %22 = arith.addf %19, %21 : vector<32x16xf32>
    %c0_9 = arith.constant 0 : index
    %c0_10 = arith.constant 0 : index
    %23 = vector.load %arg4[%c0_9, %c0_10] : memref<16x48xf32, #tpu.memory_space<vmem>>, vector<16x48xf32>
    %cst_11 = arith.constant dense<0.000000e+00> : vector<32x48xf32>
    %24 = tpu.matmul %22, %23, %cst_11 {dimension_numbers = #tpu.dot_dimension_numbers<[1], [0], [0], [1], [0, 0, 1, 1], [], []>} : vector<32x16xf32>, vector<16x48xf32>, vector<32x48xf32> -> vector<32x48xf32>
    %c0_12 = arith.constant 0 : index
    %c0_13 = arith.constant 0 : index
    %25 = vector.load %arg5[%c0_12, %c0_13] : memref<1x48xf32, #tpu.memory_space<vmem>>, vector<1x48xf32>
    %26 = vector.broadcast %25 : vector<1x48xf32> to vector<32x48xf32>
    %27 = arith.addf %24, %26 : vector<32x48xf32>
    %c0_14 = arith.constant 0 : index
    %c0_15 = arith.constant 0 : index
    %28 = vector.load %arg6[%c0_14, %c0_15] : memref<32x48xf32, #tpu.memory_space<vmem>>, vector<32x48xf32>
    tpu.vector_store %arg6[%c0_14, %c0_15], %27 {strides = array<i32>} : memref<32x48xf32, #tpu.memory_space<vmem>>, vector<32x48xf32>,
    return
  }
  func.func @transform_0(%arg0: i32) -> (i32, i32) {
    %c0_i32 = arith.constant 0 : i32
    %c0_i32_0 = arith.constant 0 : i32
    return %arg0, %c0_i32 : i32, i32
  }
  func.func @transform_1(%arg0: i32) -> (i32, i32) {
    %c0_i32 = arith.constant 0 : i32
    %c0_i32_0 = arith.constant 0 : i32
    %c0_i32_1 = arith.constant 0 : i32
    return %c0_i32, %c0_i32_0 : i32, i32
  }
  func.func @transform_2(%arg0: i32) -> (i32, i32) {
    %c0_i32 = arith.constant 0 : i32
    %c0_i32_0 = arith.constant 0 : i32
    %c0_i32_1 = arith.constant 0 : i32
    return %c0_i32, %c0_i32_0 : i32, i32
  }
  func.func @transform_3(%arg0: i32) -> (i32, i32) {
    %c0_i32 = arith.constant 0 : i32
    %c0_i32_0 = arith.constant 0 : i32
    %c0_i32_1 = arith.constant 0 : i32
    return %c0_i32, %c0_i32_0 : i32, i32
  }
  func.func @transform_4(%arg0: i32) -> (i32, i32) {
    %c0_i32 = arith.constant 0 : i32
    %c0_i32_0 = arith.constant 0 : i32
    %c0_i32_1 = arith.constant 0 : i32
    return %c0_i32, %c0_i32_0 : i32, i32
  }
  func.func @transform_5(%arg0: i32) -> (i32, i32) {
    %c0_i32 = arith.constant 0 : i32
    %c0_i32_0 = arith.constant 0 : i32
    return %arg0, %c0_i32 : i32, i32
  }
}

module attributes {stable_mosaic.version = 11 : i64} {
  func.func @_softmax_pv_kernel(%arg0: i32, %arg1: memref<64x8xf32, #tpu.memory_space<vmem>>, %arg2: memref<64x8x8xf32, #tpu.memory_space<vmem>>, %arg3: memref<64x1xi32, #tpu.memory_space<vmem>>, %arg4: memref<64x8xf32, #tpu.memory_space<vmem>>) attributes {dimension_semantics = [#tpu.dimension_semantics<parallel>], iteration_bounds = array<i64: 1>, scalar_prefetch = 0 : i64, scratch_operands = 0 : i64, tpu.core_type = #tpu.core_type<tc>, window_params = [{transform_indices = @transform_0, window_bounds = array<i64: 64, 8>}, {transform_indices = @transform_1, window_bounds = array<i64: 64, 8, 8>}, {transform_indices = @transform_2, window_bounds = array<i64: 64, 1>}, {transform_indices = @transform_3, window_bounds = array<i64: 64, 8>}]} {
    %c0 = arith.constant 0 : index
    %c0_0 = arith.constant 0 : index
    %0 = vector.load %arg1[%c0, %c0_0] : memref<64x8xf32, #tpu.memory_space<vmem>>, vector<64x8xf32>
    %c0_1 = arith.constant 0 : index
    %c0_2 = arith.constant 0 : index
    %c0_3 = arith.constant 0 : index
    %1 = vector.load %arg2[%c0_1, %c0_2, %c0_3] : memref<64x8x8xf32, #tpu.memory_space<vmem>>, vector<64x8x8xf32>
    %c0_4 = arith.constant 0 : index
    %c0_5 = arith.constant 0 : index
    %2 = vector.load %arg3[%c0_4, %c0_5] : memref<64x1xi32, #tpu.memory_space<vmem>>, vector<64x1xi32>
    %3 = tpu.iota {dimensions = array<i32: 1>} : vector<64x8xi32>
    %4 = vector.broadcast %2 : vector<64x1xi32> to vector<64x8xi32>
    %5 = arith.cmpi slt, %3, %4 : vector<64x8xi32>
    %cst = arith.constant -1.000000e+30 : f32
    %6 = vector.broadcast %cst : f32 to vector<64x8xf32>
    %7 = arith.select %5, %0, %6 : vector<64x8xi1>, vector<64x8xf32>
    %cst_6 = arith.constant dense<0xFF800000> : vector<64xf32>
    %8 = vector.multi_reduction <maximumf>, %7, %cst_6 [1] : vector<64x8xf32> to vector<64xf32>
    %9 = vector.shape_cast %8 : vector<64xf32> to vector<64x1xf32>
    %10 = vector.broadcast %9 : vector<64x1xf32> to vector<64x8xf32>
    %11 = arith.subf %7, %10 : vector<64x8xf32>
    %12 = math.exp %11 : vector<64x8xf32>
    %cst_7 = arith.constant 0.000000e+00 : f32
    %13 = vector.broadcast %cst_7 : f32 to vector<64x8xf32>
    %14 = arith.select %5, %12, %13 : vector<64x8xi1>, vector<64x8xf32>
    %cst_8 = arith.constant dense<0.000000e+00> : vector<64xf32>
    %15 = vector.multi_reduction <add>, %14, %cst_8 [1] : vector<64x8xf32> to vector<64xf32>
    %16 = vector.shape_cast %15 : vector<64xf32> to vector<64x1xf32>
    %cst_9 = arith.constant 0.000000e+00 : f32
    %17 = vector.broadcast %cst_9 : f32 to vector<64x1xf32>
    %18 = arith.cmpf ogt, %16, %17 : vector<64x1xf32>
    %cst_10 = arith.constant 1.000000e+00 : f32
    %19 = vector.broadcast %cst_10 : f32 to vector<64x1xf32>
    %20 = arith.select %18, %16, %19 : vector<64x1xi1>, vector<64x1xf32>
    %21 = tpu.reciprocal %20 {approx = true} : vector<64x1xf32> -> vector<64x1xf32>
    %22 = vector.broadcast %21 : vector<64x1xf32> to vector<64x8xf32>
    %23 = arith.mulf %14, %22 : vector<64x8xf32>
    %24 = vector.shape_cast %23 : vector<64x8xf32> to vector<64x8x1xf32>
    %25 = vector.broadcast %24 : vector<64x8x1xf32> to vector<64x8x8xf32>
    %26 = arith.mulf %25, %1 : vector<64x8x8xf32>
    %cst_11 = arith.constant dense<0.000000e+00> : vector<64x8xf32>
    %27 = vector.multi_reduction <add>, %26, %cst_11 [1] : vector<64x8x8xf32> to vector<64x8xf32>
    %c0_12 = arith.constant 0 : index
    %c0_13 = arith.constant 0 : index
    %28 = vector.load %arg4[%c0_12, %c0_13] : memref<64x8xf32, #tpu.memory_space<vmem>>, vector<64x8xf32>
    tpu.vector_store %arg4[%c0_12, %c0_13], %27 {strides = array<i32>} : memref<64x8xf32, #tpu.memory_space<vmem>>, vector<64x8xf32>,
    return
  }
  func.func @transform_0(%arg0: i32) -> (i32, i32) {
    %c0_i32 = arith.constant 0 : i32
    %c0_i32_0 = arith.constant 0 : i32
    return %arg0, %c0_i32 : i32, i32
  }
  func.func @transform_1(%arg0: i32) -> (i32, i32, i32) {
    %c0_i32 = arith.constant 0 : i32
    %c0_i32_0 = arith.constant 0 : i32
    %c0_i32_1 = arith.constant 0 : i32
    return %arg0, %c0_i32, %c0_i32_0 : i32, i32, i32
  }
  func.func @transform_2(%arg0: i32) -> (i32, i32) {
    %c0_i32 = arith.constant 0 : i32
    %c0_i32_0 = arith.constant 0 : i32
    return %arg0, %c0_i32 : i32, i32
  }
  func.func @transform_3(%arg0: i32) -> (i32, i32) {
    %c0_i32 = arith.constant 0 : i32
    %c0_i32_0 = arith.constant 0 : i32
    return %arg0, %c0_i32 : i32, i32
  }
}

module attributes {stable_mosaic.version = 11 : i64} {
  func.func @_proj_mlp_kernel(%arg0: i32, %arg1: memref<32x16xf32, #tpu.memory_space<vmem>>, %arg2: memref<32x16xf32, #tpu.memory_space<vmem>>, %arg3: memref<16x16xf32, #tpu.memory_space<vmem>>, %arg4: memref<1x16xf32, #tpu.memory_space<vmem>>, %arg5: memref<1x16xf32, #tpu.memory_space<vmem>>, %arg6: memref<1x16xf32, #tpu.memory_space<vmem>>, %arg7: memref<16x64xf32, #tpu.memory_space<vmem>>, %arg8: memref<1x64xf32, #tpu.memory_space<vmem>>, %arg9: memref<64x16xf32, #tpu.memory_space<vmem>>, %arg10: memref<1x16xf32, #tpu.memory_space<vmem>>, %arg11: memref<32x16xf32, #tpu.memory_space<vmem>>) attributes {dimension_semantics = [#tpu.dimension_semantics<parallel>], iteration_bounds = array<i64: 1>, scalar_prefetch = 0 : i64, scratch_operands = 0 : i64, tpu.core_type = #tpu.core_type<tc>, window_params = [{transform_indices = @transform_0, window_bounds = array<i64: 32, 16>}, {transform_indices = @transform_1, window_bounds = array<i64: 32, 16>}, {pipeline_mode = #tpu.pipeline_mode<synchronous>, transform_indices = @transform_2, window_bounds = array<i64: 16, 16>}, {pipeline_mode = #tpu.pipeline_mode<synchronous>, transform_indices = @transform_3, window_bounds = array<i64: 1, 16>}, {pipeline_mode = #tpu.pipeline_mode<synchronous>, transform_indices = @transform_4, window_bounds = array<i64: 1, 16>}, {pipeline_mode = #tpu.pipeline_mode<synchronous>, transform_indices = @transform_5, window_bounds = array<i64: 1, 16>}, {pipeline_mode = #tpu.pipeline_mode<synchronous>, transform_indices = @transform_6, window_bounds = array<i64: 16, 64>}, {pipeline_mode = #tpu.pipeline_mode<synchronous>, transform_indices = @transform_7, window_bounds = array<i64: 1, 64>}, {pipeline_mode = #tpu.pipeline_mode<synchronous>, transform_indices = @transform_8, window_bounds = array<i64: 64, 16>}, {pipeline_mode = #tpu.pipeline_mode<synchronous>, transform_indices = @transform_9, window_bounds = array<i64: 1, 16>}, {transform_indices = @transform_10, window_bounds = array<i64: 32, 16>}]} {
    %c0 = arith.constant 0 : index
    %c0_0 = arith.constant 0 : index
    %0 = vector.load %arg1[%c0, %c0_0] : memref<32x16xf32, #tpu.memory_space<vmem>>, vector<32x16xf32>
    %c0_1 = arith.constant 0 : index
    %c0_2 = arith.constant 0 : index
    %1 = vector.load %arg2[%c0_1, %c0_2] : memref<32x16xf32, #tpu.memory_space<vmem>>, vector<32x16xf32>
    %c0_3 = arith.constant 0 : index
    %c0_4 = arith.constant 0 : index
    %2 = vector.load %arg3[%c0_3, %c0_4] : memref<16x16xf32, #tpu.memory_space<vmem>>, vector<16x16xf32>
    %cst = arith.constant dense<0.000000e+00> : vector<32x16xf32>
    %3 = tpu.matmul %0, %2, %cst {dimension_numbers = #tpu.dot_dimension_numbers<[1], [0], [0], [1], [0, 0, 1, 1], [], []>} : vector<32x16xf32>, vector<16x16xf32>, vector<32x16xf32> -> vector<32x16xf32>
    %4 = arith.addf %1, %3 : vector<32x16xf32>
    %c0_5 = arith.constant 0 : index
    %c0_6 = arith.constant 0 : index
    %5 = vector.load %arg4[%c0_5, %c0_6] : memref<1x16xf32, #tpu.memory_space<vmem>>, vector<1x16xf32>
    %6 = vector.broadcast %5 : vector<1x16xf32> to vector<32x16xf32>
    %7 = arith.addf %4, %6 : vector<32x16xf32>
    %cst_7 = arith.constant dense<0.000000e+00> : vector<32xf32>
    %8 = vector.multi_reduction <add>, %7, %cst_7 [1] : vector<32x16xf32> to vector<32xf32>
    %9 = vector.shape_cast %8 : vector<32xf32> to vector<32x1xf32>
    %cst_8 = arith.constant 1.600000e+01 : f32
    %10 = vector.broadcast %cst_8 : f32 to vector<32x1xf32>
    %11 = arith.divf %9, %10 : vector<32x1xf32>
    %12 = vector.broadcast %11 : vector<32x1xf32> to vector<32x16xf32>
    %13 = arith.subf %7, %12 : vector<32x16xf32>
    %14 = arith.mulf %13, %13 : vector<32x16xf32>
    %cst_9 = arith.constant dense<0.000000e+00> : vector<32xf32>
    %15 = vector.multi_reduction <add>, %14, %cst_9 [1] : vector<32x16xf32> to vector<32xf32>
    %16 = vector.shape_cast %15 : vector<32xf32> to vector<32x1xf32>
    %cst_10 = arith.constant 1.600000e+01 : f32
    %17 = vector.broadcast %cst_10 : f32 to vector<32x1xf32>
    %18 = arith.divf %16, %17 : vector<32x1xf32>
    %cst_11 = arith.constant 9.99999974E-6 : f32
    %19 = vector.broadcast %cst_11 : f32 to vector<32x1xf32>
    %20 = arith.addf %18, %19 : vector<32x1xf32>
    %21 = math.rsqrt %20 : vector<32x1xf32>
    %22 = vector.broadcast %21 : vector<32x1xf32> to vector<32x16xf32>
    %23 = arith.mulf %13, %22 : vector<32x16xf32>
    %c0_12 = arith.constant 0 : index
    %c0_13 = arith.constant 0 : index
    %24 = vector.load %arg5[%c0_12, %c0_13] : memref<1x16xf32, #tpu.memory_space<vmem>>, vector<1x16xf32>
    %25 = vector.broadcast %24 : vector<1x16xf32> to vector<32x16xf32>
    %26 = arith.mulf %23, %25 : vector<32x16xf32>
    %c0_14 = arith.constant 0 : index
    %c0_15 = arith.constant 0 : index
    %27 = vector.load %arg6[%c0_14, %c0_15] : memref<1x16xf32, #tpu.memory_space<vmem>>, vector<1x16xf32>
    %28 = vector.broadcast %27 : vector<1x16xf32> to vector<32x16xf32>
    %29 = arith.addf %26, %28 : vector<32x16xf32>
    %c0_16 = arith.constant 0 : index
    %c0_17 = arith.constant 0 : index
    %30 = vector.load %arg7[%c0_16, %c0_17] : memref<16x64xf32, #tpu.memory_space<vmem>>, vector<16x64xf32>
    %cst_18 = arith.constant dense<0.000000e+00> : vector<32x64xf32>
    %31 = tpu.matmul %29, %30, %cst_18 {dimension_numbers = #tpu.dot_dimension_numbers<[1], [0], [0], [1], [0, 0, 1, 1], [], []>} : vector<32x16xf32>, vector<16x64xf32>, vector<32x64xf32> -> vector<32x64xf32>
    %c0_19 = arith.constant 0 : index
    %c0_20 = arith.constant 0 : index
    %32 = vector.load %arg8[%c0_19, %c0_20] : memref<1x64xf32, #tpu.memory_space<vmem>>, vector<1x64xf32>
    %33 = vector.broadcast %32 : vector<1x64xf32> to vector<32x64xf32>
    %34 = arith.addf %31, %33 : vector<32x64xf32>
    %cst_21 = arith.constant 5.000000e-01 : f32
    %35 = vector.broadcast %cst_21 : f32 to vector<32x64xf32>
    %36 = arith.mulf %35, %34 : vector<32x64xf32>
    %cst_22 = arith.constant 0.707106769 : f32
    %37 = vector.broadcast %cst_22 : f32 to vector<32x64xf32>
    %38 = arith.mulf %34, %37 : vector<32x64xf32>
    %39 = math.erf %38 : vector<32x64xf32>
    %cst_23 = arith.constant 1.000000e+00 : f32
    %40 = vector.broadcast %cst_23 : f32 to vector<32x64xf32>
    %41 = arith.addf %40, %39 : vector<32x64xf32>
    %42 = arith.mulf %36, %41 : vector<32x64xf32>
    %c0_24 = arith.constant 0 : index
    %c0_25 = arith.constant 0 : index
    %43 = vector.load %arg9[%c0_24, %c0_25] : memref<64x16xf32, #tpu.memory_space<vmem>>, vector<64x16xf32>
    %cst_26 = arith.constant dense<0.000000e+00> : vector<32x16xf32>
    %44 = tpu.matmul %42, %43, %cst_26 {dimension_numbers = #tpu.dot_dimension_numbers<[1], [0], [0], [1], [0, 0, 1, 1], [], []>} : vector<32x64xf32>, vector<64x16xf32>, vector<32x16xf32> -> vector<32x16xf32>
    %45 = arith.addf %7, %44 : vector<32x16xf32>
    %c0_27 = arith.constant 0 : index
    %c0_28 = arith.constant 0 : index
    %46 = vector.load %arg10[%c0_27, %c0_28] : memref<1x16xf32, #tpu.memory_space<vmem>>, vector<1x16xf32>
    %47 = vector.broadcast %46 : vector<1x16xf32> to vector<32x16xf32>
    %48 = arith.addf %45, %47 : vector<32x16xf32>
    %c0_29 = arith.constant 0 : index
    %c0_30 = arith.constant 0 : index
    %49 = vector.load %arg11[%c0_29, %c0_30] : memref<32x16xf32, #tpu.memory_space<vmem>>, vector<32x16xf32>
    tpu.vector_store %arg11[%c0_29, %c0_30], %48 {strides = array<i32>} : memref<32x16xf32, #tpu.memory_space<vmem>>, vector<32x16xf32>,
    return
  }
  func.func @transform_0(%arg0: i32) -> (i32, i32) {
    %c0_i32 = arith.constant 0 : i32
    %c0_i32_0 = arith.constant 0 : i32
    return %arg0, %c0_i32 : i32, i32
  }
  func.func @transform_1(%arg0: i32) -> (i32, i32) {
    %c0_i32 = arith.constant 0 : i32
    %c0_i32_0 = arith.constant 0 : i32
    return %arg0, %c0_i32 : i32, i32
  }
  func.func @transform_2(%arg0: i32) -> (i32, i32) {
    %c0_i32 = arith.constant 0 : i32
    %c0_i32_0 = arith.constant 0 : i32
    %c0_i32_1 = arith.constant 0 : i32
    return %c0_i32, %c0_i32_0 : i32, i32
  }
  func.func @transform_3(%arg0: i32) -> (i32, i32) {
    %c0_i32 = arith.constant 0 : i32
    %c0_i32_0 = arith.constant 0 : i32
    %c0_i32_1 = arith.constant 0 : i32
    return %c0_i32, %c0_i32_0 : i32, i32
  }
  func.func @transform_4(%arg0: i32) -> (i32, i32) {
    %c0_i32 = arith.constant 0 : i32
    %c0_i32_0 = arith.constant 0 : i32
    %c0_i32_1 = arith.constant 0 : i32
    return %c0_i32, %c0_i32_0 : i32, i32
  }
  func.func @transform_5(%arg0: i32) -> (i32, i32) {
    %c0_i32 = arith.constant 0 : i32
    %c0_i32_0 = arith.constant 0 : i32
    %c0_i32_1 = arith.constant 0 : i32
    return %c0_i32, %c0_i32_0 : i32, i32
  }
  func.func @transform_6(%arg0: i32) -> (i32, i32) {
    %c0_i32 = arith.constant 0 : i32
    %c0_i32_0 = arith.constant 0 : i32
    %c0_i32_1 = arith.constant 0 : i32
    return %c0_i32, %c0_i32_0 : i32, i32
  }
  func.func @transform_7(%arg0: i32) -> (i32, i32) {
    %c0_i32 = arith.constant 0 : i32
    %c0_i32_0 = arith.constant 0 : i32
    %c0_i32_1 = arith.constant 0 : i32
    return %c0_i32, %c0_i32_0 : i32, i32
  }
  func.func @transform_8(%arg0: i32) -> (i32, i32) {
    %c0_i32 = arith.constant 0 : i32
    %c0_i32_0 = arith.constant 0 : i32
    %c0_i32_1 = arith.constant 0 : i32
    return %c0_i32, %c0_i32_0 : i32, i32
  }
  func.func @transform_9(%arg0: i32) -> (i32, i32) {
    %c0_i32 = arith.constant 0 : i32
    %c0_i32_0 = arith.constant 0 : i32
    %c0_i32_1 = arith.constant 0 : i32
    return %c0_i32, %c0_i32_0 : i32, i32
  }
  func.func @transform_10(%arg0: i32) -> (i32, i32) {
    %c0_i32 = arith.constant 0 : i32
    %c0_i32_0 = arith.constant 0 : i32
    return %arg0, %c0_i32 : i32, i32
  }
}

</mosaic_0001>

<llo_original>
// kernel: swin_block_forward.3
$region0: #{swin_block_forward.3}
  #allocation0 [shape = 'u32[]', space=smem, size = 0x4, offset = 0x4, fixed_abs, tag = 'smem constant byte address 0x4 - core index']
  #allocation1 [shape = 'u32[144,128]{1,0:T(1,128)}', space=vmem, size = 0x12000, scoped, tag = 'internal scratch']
  %s0 = inlined_call_operand.vmem [shape: f32[32,16], index: 0, kind: input, shape index: {}]
  %s1 = inlined_call_operand.vmem [shape: f32[1,16], index: 1, kind: input, shape index: {}]
  %s2 = inlined_call_operand.vmem [shape: f32[1,16], index: 2, kind: input, shape index: {}]
  %s3 = inlined_call_operand.vmem [shape: f32[16,48], index: 3, kind: input, shape index: {}]
  %s4 = inlined_call_operand.vmem [shape: f32[1,48], index: 4, kind: input, shape index: {}]
  %s5 = inlined_call_operand.vmem [shape: f32[32,48], index: 5, kind: output, shape index: {}]
  %s6 = sld [smem:[#allocation0]]
  $region30: #{swin_block_forward.3} parent=0
    _
  %s8 = ssub.s32 1, %s6
  %s9 = scalar_select 0, %s8, %s6
  // Predicated region
  $region2: #{swin_block_forward.3} parent=0 // pred_check
    _
  $region3: #{swin_block_forward.3} parent=0 // pred_check_branch
    %11 = sbr.rel (0) target = $region5
  $region4: #{swin_block_forward.3} parent=0 // pred_region
    _
  $region5: #{swin_block_forward.3} parent=0 // pred_fallthru
    _
  // Predicated region
  $region6: #{swin_block_forward.3} parent=0 // pred_check
    _
  $region7: #{swin_block_forward.3} parent=0 // pred_check_branch
    %13 = sbr.rel (0) target = $region9
  $region8: #{swin_block_forward.3} parent=0 // pred_region
    _
  $region9: #{swin_block_forward.3} parent=0 // pred_fallthru
    _
  // Predicated region
  $region10: #{swin_block_forward.3} parent=0 // pred_check
    _
  $region11: #{swin_block_forward.3} parent=0 // pred_check_branch
    %15 = sbr.rel (0) target = $region13
  $region12: #{swin_block_forward.3} parent=0 // pred_region
    _
  $region13: #{swin_block_forward.3} parent=0 // pred_fallthru
    _
  // Predicated region
  $region14: #{swin_block_forward.3} parent=0 // pred_check
    _
  $region15: #{swin_block_forward.3} parent=0 // pred_check_branch
    %17 = sbr.rel (0) target = $region17
  $region16: #{swin_block_forward.3} parent=0 // pred_region
    _
  $region17: #{swin_block_forward.3} parent=0 // pred_fallthru
    _
  // Predicated region
  $region18: #{swin_block_forward.3} parent=0 // pred_check
    _
  $region19: #{swin_block_forward.3} parent=0 // pred_check_branch
    %19 = sbr.rel (0) target = $region21
  $region20: #{swin_block_forward.3} parent=0 // pred_region
    _
  $region21: #{swin_block_forward.3} parent=0 // pred_fallthru
    _
  %v20 = vld [vmem:[%s0] sm:$0xff]
  %v21 = vld [vmem:[%s0 + $0x8] sm:$0xff]
  %v22 = vld [vmem:[%s0 + $0x10] sm:$0xff]
  %v23 = vld [vmem:[%s0 + $0x18] sm:$0xff]
  %vm24 = vcmask 130048
  %v25 = vsel %vm24, %v20, 0.0
  %26 = vadd.xlane.f32.xlu0 %v25
  %v27 = vpop.xlane.xlu0 %26
  %v28 = vsel %vm24, %v21, 0.0
  %29 = vadd.xlane.f32.xlu0 %v28
  %v30 = vpop.xlane.xlu0 %29
  %v31 = vsel %vm24, %v22, 0.0
  %32 = vadd.xlane.f32.xlu0 %v31
  %v33 = vpop.xlane.xlu0 %32
  %v34 = vsel %vm24, %v23, 0.0
  %35 = vadd.xlane.f32.xlu0 %v34
  %v36 = vpop.xlane.xlu0 %35
  %v37 = vrcp.pop 16.0
  %v38 = vmul.f32 %v27, %v37
  %v39 = vmul.f32 %v30, %v37
  %v40 = vmul.f32 %v33, %v37
  %v41 = vmul.f32 %v36, %v37
  %v42 = vsub.f32 %v20, %v38
  %v43 = vsub.f32 %v21, %v39
  %v44 = vsub.f32 %v22, %v40
  %v45 = vsub.f32 %v23, %v41
  %v46 = vmul.f32 %v42, %v42
  %v47 = vmul.f32 %v43, %v43
  %v48 = vmul.f32 %v44, %v44
  %v49 = vmul.f32 %v45, %v45
  %v50 = vsel %vm24, %v46, 0.0
  %51 = vadd.xlane.f32.xlu0 %v50
  %v52 = vpop.xlane.xlu0 %51
  %v53 = vsel %vm24, %v47, 0.0
  %54 = vadd.xlane.f32.xlu0 %v53
  %v55 = vpop.xlane.xlu0 %54
  %v56 = vsel %vm24, %v48, 0.0
  %57 = vadd.xlane.f32.xlu0 %v56
  %v58 = vpop.xlane.xlu0 %57
  %v59 = vsel %vm24, %v49, 0.0
  %60 = vadd.xlane.f32.xlu0 %v59
  %v61 = vpop.xlane.xlu0 %60
  %v62 = vmul.f32 %v52, %v37
  %v63 = vmul.f32 %v55, %v37
  %v64 = vmul.f32 %v58, %v37
  %v65 = vmul.f32 %v61, %v37
  %v66 = vadd.f32 %v62, 1e-05
  %v67 = vadd.f32 %v63, 1e-05
  %v68 = vadd.f32 %v64, 1e-05
  %v69 = vadd.f32 %v65, 1e-05
  %v70 = vrsqrt.pop %v66
  %v71 = vrsqrt.pop %v67
  %v72 = vrsqrt.pop %v68
  %v73 = vrsqrt.pop %v69
  %v74 = vmul.f32 %v42, %v70
  %v75 = vmul.f32 %v43, %v71
  %v76 = vmul.f32 %v44, %v72
  %v77 = vmul.f32 %v45, %v73
  %v78 = vld [vmem:[%s1] sm:$0x1]
  %v80 = vlaneseq
  %v81 = vshrl.u32 %v80, 7
  %v82 = vsub.s32 0, %v81
  %v83 = vrot.slane %v78, %v82
  %v85 = vmul.f32 %v74, %v83
  %v86 = vmul.f32 %v75, %v83
  %v87 = vmul.f32 %v76, %v83
  %v88 = vmul.f32 %v77, %v83
  %v89 = vld [vmem:[%s2] sm:$0x1]
  %v91 = vlaneseq
  %v92 = vshrl.u32 %v91, 7
  %v93 = vsub.s32 0, %v92
  %v94 = vrot.slane %v89, %v93
  %v96 = vadd.f32 %v85, %v94
  %v97 = vadd.f32 %v86, %v94
  %v98 = vadd.f32 %v87, %v94
  %v99 = vadd.f32 %v88, %v94
  %v100 = vld [vmem:[%s3] sm:$0xff]
  %v101 = vld [vmem:[%s3 + $0x8] sm:$0xff]
  %v102 = vld [vmem:[%s4] sm:$0x1]
  %v104 = vlaneseq
  %v105 = vshrl.u32 %v104, 7
  %v106 = vsub.s32 0, %v105
  %v107 = vrot.slane %v102, %v106
  %v110 = vsel %vm24, %v96, 0
  %v113 = vsel %vm24, %v97, 0
  %v116 = vsel %vm24, %v98, 0
  %v119 = vsel %vm24, %v99, 0
  %121 = vmatprep.subr.mxu0 0.0
  %122 = vmatpush1.msra.mxu0 %v100
  %123 = vmatprep.subr.mxu0 0.0
  %124 = vmatpush1.msra.mxu0 %v101
  %125 = vmatprep.subr.mxu0 0.0
  %126 = vmatpush1.msra.mxu0 0.0
  %127 = vmatprep.subr.mxu0 0.0
  %128 = vmatpush1.msra.mxu0 0.0
  %129 = vmatprep.subr.mxu0 0.0
  %130 = vmatpush1.msra.mxu0 0.0
  %131 = vmatprep.subr.mxu0 0.0
  %132 = vmatpush1.msra.mxu0 0.0
  %133 = vmatprep.subr.mxu0 0.0
  %134 = vmatpush1.msra.mxu0 0.0
  %135 = vmatprep.subr.mxu0 0.0
  %136 = vmatpush1.msra.mxu0 0.0
  %137 = vmatprep.subr.mxu0 0.0
  %138 = vmatpush1.msra.mxu0 0.0
  %139 = vmatprep.subr.mxu0 0.0
  %140 = vmatpush1.msra.mxu0 0.0
  %141 = vmatprep.subr.mxu0 0.0
  %142 = vmatpush1.msra.mxu0 0.0
  %143 = vmatprep.subr.mxu0 0.0
  %144 = vmatpush1.msra.mxu0 0.0
  %145 = vmatprep.subr.mxu0 0.0
  %146 = vmatpush1.msra.mxu0 0.0
  %147 = vmatprep.subr.mxu0 0.0
  %148 = vmatpush1.msra.mxu0 0.0
  %149 = vmatprep.subr.mxu0 0.0
  %150 = vmatpush1.msra.mxu0 0.0
  %151 = vmatprep.subr.mxu0 0.0
  %152 = vmatpush1.msra.mxu0 0.0
  %153 = vmatprep.subr.mxu0 0.0
  %154 = vmatpush1.msra.mxu0 0.0
  %155 = vmatprep.subr.mxu0 0.0
  %156 = vmatpush1.msra.mxu0 0.0
  %157 = vmatprep.subr.mxu0 0.0
  %158 = vmatpush1.msra.mxu0 0.0
  %159 = vmatprep.subr.mxu0 0.0
  %160 = vmatpush1.msra.mxu0 0.0
  %161 = vmatprep.subr.mxu0 0.0
  %162 = vmatpush1.msra.mxu0 0.0
  %163 = vmatprep.subr.mxu0 0.0
  %164 = vmatpush1.msra.mxu0 0.0
  %165 = vmatprep.subr.mxu0 0.0
  %166 = vmatpush1.msra.mxu0 0.0
  %167 = vmatprep.subr.mxu0 0.0
  %168 = vmatpush1.msra.mxu0 0.0
  %169 = vmatprep.subr.mxu0 0.0
  %170 = vmatpush1.msra.mxu0 0.0
  %171 = vmatprep.subr.mxu0 0.0
  %172 = vmatpush1.msra.mxu0 0.0
  %173 = vmatprep.subr.mxu0 0.0
  %174 = vmatpush1.msra.mxu0 0.0
  %175 = vmatprep.subr.mxu0 0.0
  %176 = vmatpush1.msra.mxu0 0.0
  %177 = vmatprep.subr.mxu0 0.0
  %178 = vmatpush1.msra.mxu0 0.0
  %179 = vmatprep.subr.mxu0 0.0
  %180 = vmatpush1.msra.mxu0 0.0
  %181 = vmatprep.subr.mxu0 0.0
  %182 = vmatpush1.msra.mxu0 0.0
  %183 = vmatprep.subr.mxu0 0.0
  %184 = vmatpush1.msra.mxu0 0.0
  %185 = vmatprep.mubr.f32.mxu0 0.0
  %186 = vmatmul.mubr.f32.gmra.mrb[0].mxu0 %v110
  %v187 = vpop.f32.mrb[0].mxu0
  %v188 = vadd.f32 %v107, %v187
  %v189 = vpop.f32.mrb[0].mxu0
  %190 = vmatprep.mubr.f32.mxu0 0.0
  %191 = vmatmul.mubr.f32.gmra.mrb[0].mxu0 %v113
  %v192 = vpop.f32.mrb[0].mxu0
  %v193 = vadd.f32 %v107, %v192
  %v194 = vpop.f32.mrb[0].mxu0
  %195 = vmatprep.mubr.f32.mxu0 0.0
  %196 = vmatmul.mubr.f32.gmra.mrb[0].mxu0 %v116
  %v197 = vpop.f32.mrb[0].mxu0
  %v198 = vadd.f32 %v107, %v197
  %v199 = vpop.f32.mrb[0].mxu0
  %200 = vmatprep.mubr.f32.mxu0 0.0
  %201 = vmatmul.mubr.f32.gmra.mrb[0].mxu0 %v119
  %v202 = vpop.f32.mrb[0].mxu0
  %v203 = vadd.f32 %v107, %v202
  %v204 = vpop.f32.mrb[0].mxu0
  %205 = vdwg.mxu0
  %vm206 = vcmask 392192
  %207 = vst.msk [vmem:[%s5] sm:$0xff] %vm206, %v188
  %208 = vst.msk [vmem:[%s5 + $0x8] sm:$0xff] %vm206, %v193
  %209 = vst.msk [vmem:[%s5 + $0x10] sm:$0xff] %vm206, %v198
  %210 = vst.msk [vmem:[%s5 + $0x18] sm:$0xff] %vm206, %v203
  // Predicated region
  $region22: #{swin_block_forward.3} parent=0 // pred_check
    _
  $region23: #{swin_block_forward.3} parent=0 // pred_check_branch
    %212 = sbr.rel (0) target = $region25
  $region24: #{swin_block_forward.3} parent=0 // pred_region
    _
  $region25: #{swin_block_forward.3} parent=0 // pred_fallthru
    _
  // Predicated region
  $region26: #{swin_block_forward.3} parent=0 // pred_check
    _
  $region27: #{swin_block_forward.3} parent=0 // pred_check_branch
    %214 = sbr.rel (0) target = $region29
  $region28: #{swin_block_forward.3} parent=0 // pred_region
    _
  $region29: #{swin_block_forward.3} parent=0 // pred_fallthru
    _

// kernel: swin_block_forward.5
$region0: #{swin_block_forward.5}
  #allocation0 [shape = 'u32[]', space=smem, size = 0x4, offset = 0x4, fixed_abs, tag = 'smem constant byte address 0x4 - core index']
  #allocation1 [shape = 'u32[144,128]{1,0:T(1,128)}', space=vmem, size = 0x12000, scoped, tag = 'internal scratch']
  %s0 = inlined_call_operand.vmem [shape: f32[32,16], index: 0, kind: input, shape index: {}]
  %s1 = inlined_call_operand.vmem [shape: f32[32,16], index: 1, kind: input, shape index: {}]
  %s2 = inlined_call_operand.vmem [shape: f32[16,16], index: 2, kind: input, shape index: {}]
  %s3 = inlined_call_operand.vmem [shape: f32[1,16], index: 3, kind: input, shape index: {}]
  %s4 = inlined_call_operand.vmem [shape: f32[1,16], index: 4, kind: input, shape index: {}]
  %s5 = inlined_call_operand.vmem [shape: f32[1,16], index: 5, kind: input, shape index: {}]
  %s6 = inlined_call_operand.vmem [shape: f32[16,64], index: 6, kind: input, shape index: {}]
  %s7 = inlined_call_operand.vmem [shape: f32[1,64], index: 7, kind: input, shape index: {}]
  %s8 = inlined_call_operand.vmem [shape: f32[64,16], index: 8, kind: input, shape index: {}]
  %s9 = inlined_call_operand.vmem [shape: f32[1,16], index: 9, kind: input, shape index: {}]
  %s10 = inlined_call_operand.vmem [shape: f32[32,16], index: 10, kind: output, shape index: {}]
  %s11 = sld [smem:[#allocation0]]
  $region50: #{swin_block_forward.5} parent=0
    _
  %s13 = ssub.s32 1, %s11
  %s14 = scalar_select 0, %s13, %s11
  // Predicated region
  $region2: #{swin_block_forward.5} parent=0 // pred_check
    _
  $region3: #{swin_block_forward.5} parent=0 // pred_check_branch
    %16 = sbr.rel (0) target = $region5
  $region4: #{swin_block_forward.5} parent=0 // pred_region
    _
  $region5: #{swin_block_forward.5} parent=0 // pred_fallthru
    _
  // Predicated region
  $region6: #{swin_block_forward.5} parent=0 // pred_check
    _
  $region7: #{swin_block_forward.5} parent=0 // pred_check_branch
    %18 = sbr.rel (0) target = $region9
  $region8: #{swin_block_forward.5} parent=0 // pred_region
    _
  $region9: #{swin_block_forward.5} parent=0 // pred_fallthru
    _
  // Predicated region
  $region10: #{swin_block_forward.5} parent=0 // pred_check
    _
  $region11: #{swin_block_forward.5} parent=0 // pred_check_branch
    %20 = sbr.rel (0) target = $region13
  $region12: #{swin_block_forward.5} parent=0 // pred_region
    _
  $region13: #{swin_block_forward.5} parent=0 // pred_fallthru
    _
  // Predicated region
  $region14: #{swin_block_forward.5} parent=0 // pred_check
    _
  $region15: #{swin_block_forward.5} parent=0 // pred_check_branch
    %22 = sbr.rel (0) target = $region17
  $region16: #{swin_block_forward.5} parent=0 // pred_region
    _
  $region17: #{swin_block_forward.5} parent=0 // pred_fallthru
    _
  // Predicated region
  $region18: #{swin_block_forward.5} parent=0 // pred_check
    _
  $region19: #{swin_block_forward.5} parent=0 // pred_check_branch
    %24 = sbr.rel (0) target = $region21
  $region20: #{swin_block_forward.5} parent=0 // pred_region
    _
  $region21: #{swin_block_forward.5} parent=0 // pred_fallthru
    _
  // Predicated region
  $region22: #{swin_block_forward.5} parent=0 // pred_check
    _
  $region23: #{swin_block_forward.5} parent=0 // pred_check_branch
    %26 = sbr.rel (0) target = $region25
  $region24: #{swin_block_forward.5} parent=0 // pred_region
    _
  $region25: #{swin_block_forward.5} parent=0 // pred_fallthru
    _
  // Predicated region
  $region26: #{swin_block_forward.5} parent=0 // pred_check
    _
  $region27: #{swin_block_forward.5} parent=0 // pred_check_branch
    %28 = sbr.rel (0) target = $region29
  $region28: #{swin_block_forward.5} parent=0 // pred_region
    _
  $region29: #{swin_block_forward.5} parent=0 // pred_fallthru
    _
  // Predicated region
  $region30: #{swin_block_forward.5} parent=0 // pred_check
    _
  $region31: #{swin_block_forward.5} parent=0 // pred_check_branch
    %30 = sbr.rel (0) target = $region33
  $region32: #{swin_block_forward.5} parent=0 // pred_region
    _
  $region33: #{swin_block_forward.5} parent=0 // pred_fallthru
    _
  // Predicated region
  $region34: #{swin_block_forward.5} parent=0 // pred_check
    _
  $region35: #{swin_block_forward.5} parent=0 // pred_check_branch
    %32 = sbr.rel (0) target = $region37
  $region36: #{swin_block_forward.5} parent=0 // pred_region
    _
  $region37: #{swin_block_forward.5} parent=0 // pred_fallthru
    _
  // Predicated region
  $region38: #{swin_block_forward.5} parent=0 // pred_check
    _
  $region39: #{swin_block_forward.5} parent=0 // pred_check_branch
    %34 = sbr.rel (0) target = $region41
  $region40: #{swin_block_forward.5} parent=0 // pred_region
    _
  $region41: #{swin_block_forward.5} parent=0 // pred_fallthru
    _
  %v35 = vld [vmem:[%s0] sm:$0xff]
  %v36 = vld [vmem:[%s0 + $0x8] sm:$0xff]
  %v37 = vld [vmem:[%s0 + $0x10] sm:$0xff]
  %v38 = vld [vmem:[%s0 + $0x18] sm:$0xff]
  %v39 = vld [vmem:[%s1] sm:$0xff]
  %v40 = vld [vmem:[%s1 + $0x8] sm:$0xff]
  %v41 = vld [vmem:[%s1 + $0x10] sm:$0xff]
  %v42 = vld [vmem:[%s1 + $0x18] sm:$0xff]
  %v43 = vld [vmem:[%s2] sm:$0xff]
  %v44 = vld [vmem:[%s2 + $0x8] sm:$0xff]
  %vm45 = vcmask 130048
  %v47 = vsel %vm45, %v35, 0
  %v50 = vsel %vm45, %v36, 0
  %v53 = vsel %vm45, %v37, 0
  %v56 = vsel %vm45, %v38, 0
  %58 = vmatprep.subr.mxu0 0.0
  %59 = vmatpush1.msra.mxu0 %v43
  %60 = vmatprep.subr.mxu0 0.0
  %61 = vmatpush1.msra.mxu0 %v44
  %62 = vmatprep.subr.mxu0 0.0
  %63 = vmatpush1.msra.mxu0 0.0
  %64 = vmatprep.subr.mxu0 0.0
  %65 = vmatpush1.msra.mxu0 0.0
  %66 = vmatprep.subr.mxu0 0.0
  %67 = vmatpush1.msra.mxu0 0.0
  %68 = vmatprep.subr.mxu0 0.0
  %69 = vmatpush1.msra.mxu0 0.0
  %70 = vmatprep.subr.mxu0 0.0
  %71 = vmatpush1.msra.mxu0 0.0
  %72 = vmatprep.subr.mxu0 0.0
  %73 = vmatpush1.msra.mxu0 0.0
  %74 = vmatprep.subr.mxu0 0.0
  %75 = vmatpush1.msra.mxu0 0.0
  %76 = vmatprep.subr.mxu0 0.0
  %77 = vmatpush1.msra.mxu0 0.0
  %78 = vmatprep.subr.mxu0 0.0
  %79 = vmatpush1.msra.mxu0 0.0
  %80 = vmatprep.subr.mxu0 0.0
  %81 = vmatpush1.msra.mxu0 0.0
  %82 = vmatprep.subr.mxu0 0.0
  %83 = vmatpush1.msra.mxu0 0.0
  %84 = vmatprep.subr.mxu0 0.0
  %85 = vmatpush1.msra.mxu0 0.0
  %86 = vmatprep.subr.mxu0 0.0
  %87 = vmatpush1.msra.mxu0 0.0
  %88 = vmatprep.subr.mxu0 0.0
  %89 = vmatpush1.msra.mxu0 0.0
  %90 = vmatprep.subr.mxu0 0.0
  %91 = vmatpush1.msra.mxu0 0.0
  %92 = vmatprep.subr.mxu0 0.0
  %93 = vmatpush1.msra.mxu0 0.0
  %94 = vmatprep.subr.mxu0 0.0
  %95 = vmatpush1.msra.mxu0 0.0
  %96 = vmatprep.subr.mxu0 0.0
  %97 = vmatpush1.msra.mxu0 0.0
  %98 = vmatprep.subr.mxu0 0.0
  %99 = vmatpush1.msra.mxu0 0.0
  %100 = vmatprep.subr.mxu0 0.0
  %101 = vmatpush1.msra.mxu0 0.0
  %102 = vmatprep.subr.mxu0 0.0
  %103 = vmatpush1.msra.mxu0 0.0
  %104 = vmatprep.subr.mxu0 0.0
  %105 = vmatpush1.msra.mxu0 0.0
  %106 = vmatprep.subr.mxu0 0.0
  %107 = vmatpush1.msra.mxu0 0.0
  %108 = vmatprep.subr.mxu0 0.0
  %109 = vmatpush1.msra.mxu0 0.0
  %110 = vmatprep.subr.mxu0 0.0
  %111 = vmatpush1.msra.mxu0 0.0
  %112 = vmatprep.subr.mxu0 0.0
  %113 = vmatpush1.msra.mxu0 0.0
  %114 = vmatprep.subr.mxu0 0.0
  %115 = vmatpush1.msra.mxu0 0.0
  %116 = vmatprep.subr.mxu0 0.0
  %117 = vmatpush1.msra.mxu0 0.0
  %118 = vmatprep.subr.mxu0 0.0
  %119 = vmatpush1.msra.mxu0 0.0
  %120 = vmatprep.subr.mxu0 0.0
  %121 = vmatpush1.msra.mxu0 0.0
  %122 = vmatprep.mubr.f32.mxu0 0.0
  %123 = vmatmul.mubr.f32.gmra.mrb[0].mxu0 %v47
  %v124 = vpop.f32.mrb[0].mxu0
  %v125 = vadd.f32 0.0, %v124
  %v126 = vpop.f32.mrb[0].mxu0
  %127 = vmatprep.mubr.f32.mxu0 0.0
  %128 = vmatmul.mubr.f32.gmra.mrb[0].mxu0 %v50
  %v129 = vpop.f32.mrb[0].mxu0
  %v130 = vadd.f32 0.0, %v129
  %v131 = vpop.f32.mrb[0].mxu0
  %132 = vmatprep.mubr.f32.mxu0 0.0
  %133 = vmatmul.mubr.f32.gmra.mrb[0].mxu0 %v53
  %v134 = vpop.f32.mrb[0].mxu0
  %v135 = vadd.f32 0.0, %v134
  %v136 = vpop.f32.mrb[0].mxu0
  %137 = vmatprep.mubr.f32.mxu0 0.0
  %138 = vmatmul.mubr.f32.gmra.mrb[0].mxu0 %v56
  %v139 = vpop.f32.mrb[0].mxu0
  %v140 = vadd.f32 0.0, %v139
  %v141 = vpop.f32.mrb[0].mxu0
  %142 = vdwg.mxu0
  %v143 = vadd.f32 %v39, %v125
  %v144 = vadd.f32 %v40, %v130
  %v145 = vadd.f32 %v41, %v135
  %v146 = vadd.f32 %v42, %v140
  %v147 = vld [vmem:[%s3] sm:$0x1]
  %v149 = vlaneseq
  %v150 = vshrl.u32 %v149, 7
  %v151 = vsub.s32 0, %v150
  %v152 = vrot.slane %v147, %v151
  %v154 = vadd.f32 %v143, %v152
  %v155 = vadd.f32 %v144, %v152
  %v156 = vadd.f32 %v145, %v152
  %v157 = vadd.f32 %v146, %v152
  %v158 = vsel %vm45, %v154, 0.0
  %159 = vadd.xlane.f32.xlu0 %v158
  %v160 = vpop.xlane.xlu0 %159
  %v161 = vsel %vm45, %v155, 0.0
  %162 = vadd.xlane.f32.xlu0 %v161
  %v163 = vpop.xlane.xlu0 %162
  %v164 = vsel %vm45, %v156, 0.0
  %165 = vadd.xlane.f32.xlu0 %v164
  %v166 = vpop.xlane.xlu0 %165
  %v167 = vsel %vm45, %v157, 0.0
  %168 = vadd.xlane.f32.xlu0 %v167
  %v169 = vpop.xlane.xlu0 %168
  %v170 = vrcp.pop 16.0
  %v171 = vmul.f32 %v160, %v170
  %v172 = vmul.f32 %v163, %v170
  %v173 = vmul.f32 %v166, %v170
  %v174 = vmul.f32 %v169, %v170
  %v175 = vsub.f32 %v154, %v171
  %v176 = vsub.f32 %v155, %v172
  %v177 = vsub.f32 %v156, %v173
  %v178 = vsub.f32 %v157, %v174
  %v179 = vmul.f32 %v175, %v175
  %v180 = vmul.f32 %v176, %v176
  %v181 = vmul.f32 %v177, %v177
  %v182 = vmul.f32 %v178, %v178
  %v183 = vsel %vm45, %v179, 0.0
  %184 = vadd.xlane.f32.xlu0 %v183
  %v185 = vpop.xlane.xlu0 %184
  %v186 = vsel %vm45, %v180, 0.0
  %187 = vadd.xlane.f32.xlu0 %v186
  %v188 = vpop.xlane.xlu0 %187
  %v189 = vsel %vm45, %v181, 0.0
  %190 = vadd.xlane.f32.xlu0 %v189
  %v191 = vpop.xlane.xlu0 %190
  %v192 = vsel %vm45, %v182, 0.0
  %193 = vadd.xlane.f32.xlu0 %v192
  %v194 = vpop.xlane.xlu0 %193
  %v195 = vmul.f32 %v185, %v170
  %v196 = vmul.f32 %v188, %v170
  %v197 = vmul.f32 %v191, %v170
  %v198 = vmul.f32 %v194, %v170
  %v199 = vadd.f32 %v195, 1e-05
  %v200 = vadd.f32 %v196, 1e-05
  %v201 = vadd.f32 %v197, 1e-05
  %v202 = vadd.f32 %v198, 1e-05
  %v203 = vrsqrt.pop %v199
  %v204 = vrsqrt.pop %v200
  %v205 = vrsqrt.pop %v201
  %v206 = vrsqrt.pop %v202
  %v207 = vmul.f32 %v175, %v203
  %v208 = vmul.f32 %v176, %v204
  %v209 = vmul.f32 %v177, %v205
  %v210 = vmul.f32 %v178, %v206
  %v211 = vld [vmem:[%s4] sm:$0x1]
  %v213 = vlaneseq
  %v214 = vshrl.u32 %v213, 7
  %v215 = vsub.s32 0, %v214
  %v216 = vrot.slane %v211, %v215
  %v218 = vmul.f32 %v207, %v216
  %v219 = vmul.f32 %v208, %v216
  %v220 = vmul.f32 %v209, %v216
  %v221 = vmul.f32 %v210, %v216
  %v222 = vld [vmem:[%s5] sm:$0x1]
  %v224 = vlaneseq
  %v225 = vshrl.u32 %v224, 7
  %v226 = vsub.s32 0, %v225
  %v227 = vrot.slane %v222, %v226
  %v229 = vadd.f32 %v218, %v227
  %v230 = vadd.f32 %v219, %v227
  %v231 = vadd.f32 %v220, %v227
  %v232 = vadd.f32 %v221, %v227
  %v233 = vld [vmem:[%s6] sm:$0xff]
  %v234 = vld [vmem:[%s6 + $0x8] sm:$0xff]
  %v235 = vld [vmem:[%s7] sm:$0x1]
  %v237 = vlaneseq
  %v238 = vshrl.u32 %v237, 7
  %v239 = vsub.s32 0, %v238
  %v240 = vrot.slane %v235, %v239
  %v243 = vsel %vm45, %v229, 0
  %v246 = vsel %vm45, %v230, 0
  %v249 = vsel %vm45, %v231, 0
  %v252 = vsel %vm45, %v232, 0
  %254 = vmatprep.subr.mxu0 0.0
  %255 = vmatpush1.msra.mxu0 %v233
  %256 = vmatprep.subr.mxu0 0.0
  %257 = vmatpush1.msra.mxu0 %v234
  %258 = vmatprep.subr.mxu0 0.0
  %259 = vmatpush1.msra.mxu0 0.0
  %260 = vmatprep.subr.mxu0 0.0
  %261 = vmatpush1.msra.mxu0 0.0
  %262 = vmatprep.subr.mxu0 0.0
  %263 = vmatpush1.msra.mxu0 0.0
  %264 = vmatprep.subr.mxu0 0.0
  %265 = vmatpush1.msra.mxu0 0.0
  %266 = vmatprep.subr.mxu0 0.0
  %267 = vmatpush1.msra.mxu0 0.0
  %268 = vmatprep.subr.mxu0 0.0
  %269 = vmatpush1.msra.mxu0 0.0
  %270 = vmatprep.subr.mxu0 0.0
  %271 = vmatpush1.msra.mxu0 0.0
  %272 = vmatprep.subr.mxu0 0.0
  %273 = vmatpush1.msra.mxu0 0.0
  %274 = vmatprep.subr.mxu0 0.0
  %275 = vmatpush1.msra.mxu0 0.0
  %276 = vmatprep.subr.mxu0 0.0
  %277 = vmatpush1.msra.mxu0 0.0
  %278 = vmatprep.subr.mxu0 0.0
  %279 = vmatpush1.msra.mxu0 0.0
  %280 = vmatprep.subr.mxu0 0.0
  %281 = vmatpush1.msra.mxu0 0.0
  %282 = vmatprep.subr.mxu0 0.0
  %283 = vmatpush1.msra.mxu0 0.0
  %284 = vmatprep.subr.mxu0 0.0
  %285 = vmatpush1.msra.mxu0 0.0
  %286 = vmatprep.subr.mxu0 0.0
  %287 = vmatpush1.msra.mxu0 0.0
  %288 = vmatprep.subr.mxu0 0.0
  %289 = vmatpush1.msra.mxu0 0.0
  %290 = vmatprep.subr.mxu0 0.0
  %291 = vmatpush1.msra.mxu0 0.0
  %292 = vmatprep.subr.mxu0 0.0
  %293 = vmatpush1.msra.mxu0 0.0
  %294 = vmatprep.subr.mxu0 0.0
  %295 = vmatpush1.msra.mxu0 0.0
  %296 = vmatprep.subr.mxu0 0.0
  %297 = vmatpush1.msra.mxu0 0.0
  %298 = vmatprep.subr.mxu0 0.0
  %299 = vmatpush1.msra.mxu0 0.0
  %300 = vmatprep.subr.mxu0 0.0
  %301 = vmatpush1.msra.mxu0 0.0
  %302 = vmatprep.subr.mxu0 0.0
  %303 = vmatpush1.msra.mxu0 0.0
  %304 = vmatprep.subr.mxu0 0.0
  %305 = vmatpush1.msra.mxu0 0.0
  %306 = vmatprep.subr.mxu0 0.0
  %307 = vmatpush1.msra.mxu0 0.0
  %308 = vmatprep.subr.mxu0 0.0
  %309 = vmatpush1.msra.mxu0 0.0
  %310 = vmatprep.subr.mxu0 0.0
  %311 = vmatpush1.msra.mxu0 0.0
  %312 = vmatprep.subr.mxu0 0.0
  %313 = vmatpush1.msra.mxu0 0.0
  %314 = vmatprep.subr.mxu0 0.0
  %315 = vmatpush1.msra.mxu0 0.0
  %316 = vmatprep.subr.mxu0 0.0
  %317 = vmatpush1.msra.mxu0 0.0
  %318 = vmatprep.mubr.f32.mxu0 0.0
  %319 = vmatmul.mubr.f32.gmra.mrb[0].mxu0 %v243
  %v320 = vpop.f32.mrb[0].mxu0
  %v321 = vadd.f32 %v240, %v320
  %v322 = vpop.f32.mrb[0].mxu0
  %323 = vmatprep.mubr.f32.mxu0 0.0
  %324 = vmatmul.mubr.f32.gmra.mrb[0].mxu0 %v246
  %v325 = vpop.f32.mrb[0].mxu0
  %v326 = vadd.f32 %v240, %v325
  %v327 = vpop.f32.mrb[0].mxu0
  %328 = vmatprep.mubr.f32.mxu0 0.0
  %329 = vmatmul.mubr.f32.gmra.mrb[0].mxu0 %v249
  %v330 = vpop.f32.mrb[0].mxu0
  %v331 = vadd.f32 %v240, %v330
  %v332 = vpop.f32.mrb[0].mxu0
  %333 = vmatprep.mubr.f32.mxu0 0.0
  %334 = vmatmul.mubr.f32.gmra.mrb[0].mxu0 %v252
  %v335 = vpop.f32.mrb[0].mxu0
  %v336 = vadd.f32 %v240, %v335
  %v337 = vpop.f32.mrb[0].mxu0
  %338 = vdwg.mxu0
  %v339 = vmul.f32 %v321, 0.5
  %v340 = vmul.f32 %v326, 0.5
  %v341 = vmul.f32 %v331, 0.5
  %v342 = vmul.f32 %v336, 0.5
  %v343 = vmul.f32 %v321, 0.70710677
  %v344 = vmul.f32 %v326, 0.70710677
  %v345 = vmul.f32 %v331, 0.70710677
  %v346 = vmul.f32 %v336, 0.70710677
  %v347 = verf.f32.pop %v343
  %v348 = verf.f32.pop %v344
  %v349 = verf.f32.pop %v345
  %v350 = verf.f32.pop %v346
  %v351 = vadd.f32 %v347, 1.0
  %v352 = vadd.f32 %v348, 1.0
  %v353 = vadd.f32 %v349, 1.0
  %v354 = vadd.f32 %v350, 1.0
  %v355 = vmul.f32 %v339, %v351
  %v356 = vmul.f32 %v340, %v352
  %v357 = vmul.f32 %v341, %v353
  %v358 = vmul.f32 %v342, %v354
  %v359 = vld [vmem:[%s8] sm:$0xff]
  %v360 = vld [vmem:[%s8 + $0x8] sm:$0xff]
  %v361 = vld [vmem:[%s8 + $0x10] sm:$0xff]
  %v362 = vld [vmem:[%s8 + $0x18] sm:$0xff]
  %v363 = vld [vmem:[%s8 + $0x20] sm:$0xff]
  %v364 = vld [vmem:[%s8 + $0x28] sm:$0xff]
  %v365 = vld [vmem:[%s8 + $0x30] sm:$0xff]
  %v366 = vld [vmem:[%s8 + $0x38] sm:$0xff]
  %vm367 = vcmask 523264
  %v369 = vsel %vm367, %v355, 0
  %v372 = vsel %vm367, %v356, 0
  %v375 = vsel %vm367, %v357, 0
  %v378 = vsel %vm367, %v358, 0
  %380 = vmatprep.subr.mxu0 0.0
  %381 = vmatpush1.msra.mxu0 %v359
  %382 = vmatprep.subr.mxu0 0.0
  %383 = vmatpush1.msra.mxu0 %v360
  %384 = vmatprep.subr.mxu0 0.0
  %385 = vmatpush1.msra.mxu0 %v361
  %386 = vmatprep.subr.mxu0 0.0
  %387 = vmatpush1.msra.mxu0 %v362
  %388 = vmatprep.subr.mxu0 0.0
  %389 = vmatpush1.msra.mxu0 %v363
  %390 = vmatprep.subr.mxu0 0.0
  %391 = vmatpush1.msra.mxu0 %v364
  %392 = vmatprep.subr.mxu0 0.0
  %393 = vmatpush1.msra.mxu0 %v365
  %394 = vmatprep.subr.mxu0 0.0
  %395 = vmatpush1.msra.mxu0 %v366
  %396 = vmatprep.subr.mxu0 0.0
  %397 = vmatpush1.msra.mxu0 0.0
  %398 = vmatprep.subr.mxu0 0.0
  %399 = vmatpush1.msra.mxu0 0.0
  %400 = vmatprep.subr.mxu0 0.0
  %401 = vmatpush1.msra.mxu0 0.0
  %402 = vmatprep.subr.mxu0 0.0
  %403 = vmatpush1.msra.mxu0 0.0
  %404 = vmatprep.subr.mxu0 0.0
  %405 = vmatpush1.msra.mxu0 0.0
  %406 = vmatprep.subr.mxu0 0.0
  %407 = vmatpush1.msra.mxu0 0.0
  %408 = vmatprep.subr.mxu0 0.0
  %409 = vmatpush1.msra.mxu0 0.0
  %410 = vmatprep.subr.mxu0 0.0
  %411 = vmatpush1.msra.mxu0 0.0
  %412 = vmatprep.subr.mxu0 0.0
  %413 = vmatpush1.msra.mxu0 0.0
  %414 = vmatprep.subr.mxu0 0.0
  %415 = vmatpush1.msra.mxu0 0.0
  %416 = vmatprep.subr.mxu0 0.0
  %417 = vmatpush1.msra.mxu0 0.0
  %418 = vmatprep.subr.mxu0 0.0
  %419 = vmatpush1.msra.mxu0 0.0
  %420 = vmatprep.subr.mxu0 0.0
  %421 = vmatpush1.msra.mxu0 0.0
  %422 = vmatprep.subr.mxu0 0.0
  %423 = vmatpush1.msra.mxu0 0.0
  %424 = vmatprep.subr.mxu0 0.0
  %425 = vmatpush1.msra.mxu0 0.0
  %426 = vmatprep.subr.mxu0 0.0
  %427 = vmatpush1.msra.mxu0 0.0
  %428 = vmatprep.subr.mxu0 0.0
  %429 = vmatpush1.msra.mxu0 0.0
  %430 = vmatprep.subr.mxu0 0.0
  %431 = vmatpush1.msra.mxu0 0.0
  %432 = vmatprep.subr.mxu0 0.0
  %433 = vmatpush1.msra.mxu0 0.0
  %434 = vmatprep.subr.mxu0 0.0
  %435 = vmatpush1.msra.mxu0 0.0
  %436 = vmatprep.subr.mxu0 0.0
  %437 = vmatpush1.msra.mxu0 0.0
  %438 = vmatprep.subr.mxu0 0.0
  %439 = vmatpush1.msra.mxu0 0.0
  %440 = vmatprep.subr.mxu0 0.0
  %441 = vmatpush1.msra.mxu0 0.0
  %442 = vmatprep.subr.mxu0 0.0
  %443 = vmatpush1.msra.mxu0 0.0
  %444 = vmatprep.mubr.f32.mxu0 0.0
  %445 = vmatmul.mubr.f32.gmra.mrb[0].mxu0 %v369
  %v446 = vpop.f32.mrb[0].mxu0
  %v447 = vadd.f32 0.0, %v446
  %v448 = vpop.f32.mrb[0].mxu0
  %449 = vmatprep.mubr.f32.mxu0 0.0
  %450 = vmatmul.mubr.f32.gmra.mrb[0].mxu0 %v372
  %v451 = vpop.f32.mrb[0].mxu0
  %v452 = vadd.f32 0.0, %v451
  %v453 = vpop.f32.mrb[0].mxu0
  %454 = vmatprep.mubr.f32.mxu0 0.0
  %455 = vmatmul.mubr.f32.gmra.mrb[0].mxu0 %v375
  %v456 = vpop.f32.mrb[0].mxu0
  %v457 = vadd.f32 0.0, %v456
  %v458 = vpop.f32.mrb[0].mxu0
  %459 = vmatprep.mubr.f32.mxu0 0.0
  %460 = vmatmul.mubr.f32.gmra.mrb[0].mxu0 %v378
  %v461 = vpop.f32.mrb[0].mxu0
  %v462 = vadd.f32 0.0, %v461
  %v463 = vpop.f32.mrb[0].mxu0
  %464 = vdwg.mxu0
  %v465 = vadd.f32 %v154, %v447
  %v466 = vadd.f32 %v155, %v452
  %v467 = vadd.f32 %v156, %v457
  %v468 = vadd.f32 %v157, %v462
  %v469 = vld [vmem:[%s9] sm:$0x1]
  %v471 = vlaneseq
  %v472 = vshrl.u32 %v471, 7
  %v473 = vsub.s32 0, %v472
  %v474 = vrot.slane %v469, %v473
  %v476 = vadd.f32 %v465, %v474
  %v477 = vadd.f32 %v466, %v474
  %v478 = vadd.f32 %v467, %v474
  %v479 = vadd.f32 %v468, %v474
  %480 = vst.msk [vmem:[%s10] sm:$0xff] %vm45, %v476
  %481 = vst.msk [vmem:[%s10 + $0x8] sm:$0xff] %vm45, %v477
  %482 = vst.msk [vmem:[%s10 + $0x10] sm:$0xff] %vm45, %v478
  %483 = vst.msk [vmem:[%s10 + $0x18] sm:$0xff] %vm45, %v479
  // Predicated region
  $region42: #{swin_block_forward.5} parent=0 // pred_check
    _
  $region43: #{swin_block_forward.5} parent=0 // pred_check_branch
    %485 = sbr.rel (0) target = $region45
  $region44: #{swin_block_forward.5} parent=0 // pred_region
    _
  $region45: #{swin_block_forward.5} parent=0 // pred_fallthru
    _
  // Predicated region
  $region46: #{swin_block_forward.5} parent=0 // pred_check
    _
  $region47: #{swin_block_forward.5} parent=0 // pred_check_branch
    %487 = sbr.rel (0) target = $region49
  $region48: #{swin_block_forward.5} parent=0 // pred_region
    _
  $region49: #{swin_block_forward.5} parent=0 // pred_fallthru
    _

// kernel: swin_block_forward.4
$region0: #{swin_block_forward.4}
  #allocation0 [shape = 'u32[]', space=smem, size = 0x4, offset = 0x4, fixed_abs, tag = 'smem constant byte address 0x4 - core index']
  #allocation1 [shape = 'u32[144,128]{1,0:T(1,128)}', space=vmem, size = 0x12000, scoped, tag = 'internal scratch']
  %s0 = inlined_call_operand.vmem [shape: f32[64,8], index: 0, kind: input, shape index: {}]
  %s1 = inlined_call_operand.vmem [shape: f32[64,8,8], index: 1, kind: input, shape index: {}]
  %s2 = inlined_call_operand.vmem [shape: s32[64,1], index: 2, kind: input, shape index: {}]
  %s3 = inlined_call_operand.vmem [shape: f32[64,8], index: 3, kind: output, shape index: {}]
  %s4 = sld [smem:[#allocation0]]
  $region22: #{swin_block_forward.4} parent=0
    _
  %s6 = ssub.s32 1, %s4
  %s7 = scalar_select 0, %s6, %s4
  // Predicated region
  $region2: #{swin_block_forward.4} parent=0 // pred_check
    _
  $region3: #{swin_block_forward.4} parent=0 // pred_check_branch
    %9 = sbr.rel (0) target = $region5
  $region4: #{swin_block_forward.4} parent=0 // pred_region
    _
  $region5: #{swin_block_forward.4} parent=0 // pred_fallthru
    _
  // Predicated region
  $region6: #{swin_block_forward.4} parent=0 // pred_check
    _
  $region7: #{swin_block_forward.4} parent=0 // pred_check_branch
    %11 = sbr.rel (0) target = $region9
  $region8: #{swin_block_forward.4} parent=0 // pred_region
    _
  $region9: #{swin_block_forward.4} parent=0 // pred_fallthru
    _
  // Predicated region
  $region10: #{swin_block_forward.4} parent=0 // pred_check
    _
  $region11: #{swin_block_forward.4} parent=0 // pred_check_branch
    %13 = sbr.rel (0) target = $region13
  $region12: #{swin_block_forward.4} parent=0 // pred_region
    _
  $region13: #{swin_block_forward.4} parent=0 // pred_fallthru
    _
  %v14 = vld [vmem:[%s0] sm:$0xff]
  %v15 = vld [vmem:[%s0 + $0x8] sm:$0xff]
  %v16 = vld [vmem:[%s0 + $0x10] sm:$0xff]
  %v17 = vld [vmem:[%s0 + $0x18] sm:$0xff]
  %v18 = vld [vmem:[%s0 + $0x20] sm:$0xff]
  %v19 = vld [vmem:[%s0 + $0x28] sm:$0xff]
  %v20 = vld [vmem:[%s0 + $0x30] sm:$0xff]
  %v21 = vld [vmem:[%s0 + $0x38] sm:$0xff]
  %v22 = vld [vmem:[%s1] sm:$0xff]
  %v23 = vld [vmem:[%s1 + $0x8] sm:$0xff]
  %v24 = vld [vmem:[%s1 + $0x10] sm:$0xff]
  %v25 = vld [vmem:[%s1 + $0x18] sm:$0xff]
  %v26 = vld [vmem:[%s1 + $0x20] sm:$0xff]
  %v27 = vld [vmem:[%s1 + $0x28] sm:$0xff]
  %v28 = vld [vmem:[%s1 + $0x30] sm:$0xff]
  %v29 = vld [vmem:[%s1 + $0x38] sm:$0xff]
  %v30 = vld [vmem:[%s1 + $0x40] sm:$0xff]
  %v31 = vld [vmem:[%s1 + $0x48] sm:$0xff]
  %v32 = vld [vmem:[%s1 + $0x50] sm:$0xff]
  %v33 = vld [vmem:[%s1 + $0x58] sm:$0xff]
  %v34 = vld [vmem:[%s1 + $0x60] sm:$0xff]
  %v35 = vld [vmem:[%s1 + $0x68] sm:$0xff]
  %v36 = vld [vmem:[%s1 + $0x70] sm:$0xff]
  %v37 = vld [vmem:[%s1 + $0x78] sm:$0xff]
  %v38 = vld [vmem:[%s1 + $0x80] sm:$0xff]
  %v39 = vld [vmem:[%s1 + $0x88] sm:$0xff]
  %v40 = vld [vmem:[%s1 + $0x90] sm:$0xff]
  %v41 = vld [vmem:[%s1 + $0x98] sm:$0xff]
  %v42 = vld [vmem:[%s1 + $0xa0] sm:$0xff]
  %v43 = vld [vmem:[%s1 + $0xa8] sm:$0xff]
  %v44 = vld [vmem:[%s1 + $0xb0] sm:$0xff]
  %v45 = vld [vmem:[%s1 + $0xb8] sm:$0xff]
  %v46 = vld [vmem:[%s1 + $0xc0] sm:$0xff]
  %v47 = vld [vmem:[%s1 + $0xc8] sm:$0xff]
  %v48 = vld [vmem:[%s1 + $0xd0] sm:$0xff]
  %v49 = vld [vmem:[%s1 + $0xd8] sm:$0xff]
  %v50 = vld [vmem:[%s1 + $0xe0] sm:$0xff]
  %v51 = vld [vmem:[%s1 + $0xe8] sm:$0xff]
  %v52 = vld [vmem:[%s1 + $0xf0] sm:$0xff]
  %v53 = vld [vmem:[%s1 + $0xf8] sm:$0xff]
  %v54 = vld [vmem:[%s1 + $0x100] sm:$0xff]
  %v55 = vld [vmem:[%s1 + $0x108] sm:$0xff]
  %v56 = vld [vmem:[%s1 + $0x110] sm:$0xff]
  %v57 = vld [vmem:[%s1 + $0x118] sm:$0xff]
  %v58 = vld [vmem:[%s1 + $0x120] sm:$0xff]
  %v59 = vld [vmem:[%s1 + $0x128] sm:$0xff]
  %v60 = vld [vmem:[%s1 + $0x130] sm:$0xff]
  %v61 = vld [vmem:[%s1 + $0x138] sm:$0xff]
  %v62 = vld [vmem:[%s1 + $0x140] sm:$0xff]
  %v63 = vld [vmem:[%s1 + $0x148] sm:$0xff]
  %v64 = vld [vmem:[%s1 + $0x150] sm:$0xff]
  %v65 = vld [vmem:[%s1 + $0x158] sm:$0xff]
  %v66 = vld [vmem:[%s1 + $0x160] sm:$0xff]
  %v67 = vld [vmem:[%s1 + $0x168] sm:$0xff]
  %v68 = vld [vmem:[%s1 + $0x170] sm:$0xff]
  %v69 = vld [vmem:[%s1 + $0x178] sm:$0xff]
  %v70 = vld [vmem:[%s1 + $0x180] sm:$0xff]
  %v71 = vld [vmem:[%s1 + $0x188] sm:$0xff]
  %v72 = vld [vmem:[%s1 + $0x190] sm:$0xff]
  %v73 = vld [vmem:[%s1 + $0x198] sm:$0xff]
  %v74 = vld [vmem:[%s1 + $0x1a0] sm:$0xff]
  %v75 = vld [vmem:[%s1 + $0x1a8] sm:$0xff]
  %v76 = vld [vmem:[%s1 + $0x1b0] sm:$0xff]
  %v77 = vld [vmem:[%s1 + $0x1b8] sm:$0xff]
  %v78 = vld [vmem:[%s1 + $0x1c0] sm:$0xff]
  %v79 = vld [vmem:[%s1 + $0x1c8] sm:$0xff]
  %v80 = vld [vmem:[%s1 + $0x1d0] sm:$0xff]
  %v81 = vld [vmem:[%s1 + $0x1d8] sm:$0xff]
  %v82 = vld [vmem:[%s1 + $0x1e0] sm:$0xff]
  %v83 = vld [vmem:[%s1 + $0x1e8] sm:$0xff]
  %v84 = vld [vmem:[%s1 + $0x1f0] sm:$0xff]
  %v85 = vld [vmem:[%s1 + $0x1f8] sm:$0xff]
  %v86 = vld [vmem:[%s2] sm:$0xff]
  %v87 = vld [vmem:[%s2 + $0x8] sm:$0xff]
  %v88 = vld [vmem:[%s2 + $0x10] sm:$0xff]
  %v89 = vld [vmem:[%s2 + $0x18] sm:$0xff]
  %v90 = vld [vmem:[%s2 + $0x20] sm:$0xff]
  %v91 = vld [vmem:[%s2 + $0x28] sm:$0xff]
  %v92 = vld [vmem:[%s2 + $0x30] sm:$0xff]
  %v93 = vld [vmem:[%s2 + $0x38] sm:$0xff]
  %v94 = vlaneseq
  %v95 = vand.u32 %v94, 127
  %96 = vset.pattern.permute.xlu0 0
  %97 = vperm.xlu0 %96, %v86
  %v98 = vpop.permute.xlu0 %97
  %99 = vset.pattern.permute.xlu0 0
  %100 = vperm.xlu0 %99, %v87
  %v101 = vpop.permute.xlu0 %100
  %102 = vset.pattern.permute.xlu0 0
  %103 = vperm.xlu0 %102, %v88
  %v104 = vpop.permute.xlu0 %103
  %105 = vset.pattern.permute.xlu0 0
  %106 = vperm.xlu0 %105, %v89
  %v107 = vpop.permute.xlu0 %106
  %108 = vset.pattern.permute.xlu0 0
  %109 = vperm.xlu0 %108, %v90
  %v110 = vpop.permute.xlu0 %109
  %111 = vset.pattern.permute.xlu0 0
  %112 = vperm.xlu0 %111, %v91
  %v113 = vpop.permute.xlu0 %112
  %114 = vset.pattern.permute.xlu0 0
  %115 = vperm.xlu0 %114, %v92
  %v116 = vpop.permute.xlu0 %115
  %117 = vset.pattern.permute.xlu0 0
  %118 = vperm.xlu0 %117, %v93
  %v119 = vpop.permute.xlu0 %118
  %vm120 = vcmp.lt.s32.totalorder %v95, %v98
  %vm121 = vcmp.lt.s32.totalorder %v95, %v101
  %vm122 = vcmp.lt.s32.totalorder %v95, %v104
  %vm123 = vcmp.lt.s32.totalorder %v95, %v107
  %vm124 = vcmp.lt.s32.totalorder %v95, %v110
  %vm125 = vcmp.lt.s32.totalorder %v95, %v113
  %vm126 = vcmp.lt.s32.totalorder %v95, %v116
  %vm127 = vcmp.lt.s32.totalorder %v95, %v119
  %v128 = vsel %vm120, %v14, -1e+30
  %v129 = vsel %vm121, %v15, -1e+30
  %v130 = vsel %vm122, %v16, -1e+30
  %v131 = vsel %vm123, %v17, -1e+30
  %v132 = vsel %vm124, %v18, -1e+30
  %v133 = vsel %vm125, %v19, -1e+30
  %v134 = vsel %vm126, %v20, -1e+30
  %v135 = vsel %vm127, %v21, -1e+30
  %vm136 = vcmask 64512
  %v137 = vsel %vm136, %v128, -inf
  %138 = vmax.xlane.f32.xlu0 %v137
  %v139 = vpop.xlane.xlu0 %138
  %v140 = vsel %vm136, %v129, -inf
  %141 = vmax.xlane.f32.xlu0 %v140
  %v142 = vpop.xlane.xlu0 %141
  %v143 = vsel %vm136, %v130, -inf
  %144 = vmax.xlane.f32.xlu0 %v143
  %v145 = vpop.xlane.xlu0 %144
  %v146 = vsel %vm136, %v131, -inf
  %147 = vmax.xlane.f32.xlu0 %v146
  %v148 = vpop.xlane.xlu0 %147
  %v149 = vsel %vm136, %v132, -inf
  %150 = vmax.xlane.f32.xlu0 %v149
  %v151 = vpop.xlane.xlu0 %150
  %v152 = vsel %vm136, %v133, -inf
  %153 = vmax.xlane.f32.xlu0 %v152
  %v154 = vpop.xlane.xlu0 %153
  %v155 = vsel %vm136, %v134, -inf
  %156 = vmax.xlane.f32.xlu0 %v155
  %v157 = vpop.xlane.xlu0 %156
  %v158 = vsel %vm136, %v135, -inf
  %159 = vmax.xlane.f32.xlu0 %v158
  %v160 = vpop.xlane.xlu0 %159
  %v161 = vsub.f32 %v128, %v139
  %v162 = vsub.f32 %v129, %v142
  %v163 = vsub.f32 %v130, %v145
  %v164 = vsub.f32 %v131, %v148
  %v165 = vsub.f32 %v132, %v151
  %v166 = vsub.f32 %v133, %v154
  %v167 = vsub.f32 %v134, %v157
  %v168 = vsub.f32 %v135, %v160
  %v169 = vmul.f32 %v161, 1.442695
  %v170 = vpow.pop %v169
  %v171 = vmul.f32 %v162, 1.442695
  %v172 = vpow.pop %v171
  %v173 = vmul.f32 %v163, 1.442695
  %v174 = vpow.pop %v173
  %v175 = vmul.f32 %v164, 1.442695
  %v176 = vpow.pop %v175
  %v177 = vmul.f32 %v165, 1.442695
  %v178 = vpow.pop %v177
  %v179 = vmul.f32 %v166, 1.442695
  %v180 = vpow.pop %v179
  %v181 = vmul.f32 %v167, 1.442695
  %v182 = vpow.pop %v181
  %v183 = vmul.f32 %v168, 1.442695
  %v184 = vpow.pop %v183
  %v185 = vsel %vm120, %v170, 0.0
  %v186 = vsel %vm121, %v172, 0.0
  %v187 = vsel %vm122, %v174, 0.0
  %v188 = vsel %vm123, %v176, 0.0
  %v189 = vsel %vm124, %v178, 0.0
  %v190 = vsel %vm125, %v180, 0.0
  %v191 = vsel %vm126, %v182, 0.0
  %v192 = vsel %vm127, %v184, 0.0
  %v193 = vsel %vm136, %v185, 0.0
  %194 = vadd.xlane.f32.xlu0 %v193
  %v195 = vpop.xlane.xlu0 %194
  %v196 = vsel %vm136, %v186, 0.0
  %197 = vadd.xlane.f32.xlu0 %v196
  %v198 = vpop.xlane.xlu0 %197
  %v199 = vsel %vm136, %v187, 0.0
  %200 = vadd.xlane.f32.xlu0 %v199
  %v201 = vpop.xlane.xlu0 %200
  %v202 = vsel %vm136, %v188, 0.0
  %203 = vadd.xlane.f32.xlu0 %v202
  %v204 = vpop.xlane.xlu0 %203
  %v205 = vsel %vm136, %v189, 0.0
  %206 = vadd.xlane.f32.xlu0 %v205
  %v207 = vpop.xlane.xlu0 %206
  %v208 = vsel %vm136, %v190, 0.0
  %209 = vadd.xlane.f32.xlu0 %v208
  %v210 = vpop.xlane.xlu0 %209
  %v211 = vsel %vm136, %v191, 0.0
  %212 = vadd.xlane.f32.xlu0 %v211
  %v213 = vpop.xlane.xlu0 %212
  %v214 = vsel %vm136, %v192, 0.0
  %215 = vadd.xlane.f32.xlu0 %v214
  %v216 = vpop.xlane.xlu0 %215
  %vm217 = vcmp.gt.f32.partialorder %v195, 0.0
  %vm218 = vcmp.gt.f32.partialorder %v198, 0.0
  %vm219 = vcmp.gt.f32.partialorder %v201, 0.0
  %vm220 = vcmp.gt.f32.partialorder %v204, 0.0
  %vm221 = vcmp.gt.f32.partialorder %v207, 0.0
  %vm222 = vcmp.gt.f32.partialorder %v210, 0.0
  %vm223 = vcmp.gt.f32.partialorder %v213, 0.0
  %vm224 = vcmp.gt.f32.partialorder %v216, 0.0
  %v225 = vsel %vm217, %v195, 1.0
  %v226 = vsel %vm218, %v198, 1.0
  %v227 = vsel %vm219, %v201, 1.0
  %v228 = vsel %vm220, %v204, 1.0
  %v229 = vsel %vm221, %v207, 1.0
  %v230 = vsel %vm222, %v210, 1.0
  %v231 = vsel %vm223, %v213, 1.0
  %v232 = vsel %vm224, %v216, 1.0
  %v233 = vrcp.pop %v225
  %v234 = vrcp.pop %v226
  %v235 = vrcp.pop %v227
  %v236 = vrcp.pop %v228
  %v237 = vrcp.pop %v229
  %v238 = vrcp.pop %v230
  %v239 = vrcp.pop %v231
  %v240 = vrcp.pop %v232
  %v241 = vmul.f32 %v185, %v233
  %v242 = vmul.f32 %v186, %v234
  %v243 = vmul.f32 %v187, %v235
  %v244 = vmul.f32 %v188, %v236
  %v245 = vmul.f32 %v189, %v237
  %v246 = vmul.f32 %v190, %v238
  %v247 = vmul.f32 %v191, %v239
  %v248 = vmul.f32 %v192, %v240
  %v249 = vlaneseq
  %v250 = vshrl.u32 %v249, 7
  %v251 = vsub.s32 0, %v250
  %v252 = vrot.slane %v241, %v251
  %254 = vbcast.lane.b32.xlu0 %v252, 256
  %v255 = vpop.permute.xlu0 %254
  %v256 = vlaneseq
  %v257 = vshrl.u32 %v256, 7
  %v258 = vsub.s32 1, %v257
  %v259 = vrot.slane %v241, %v258
  %261 = vbcast.lane.b32.xlu0 %v259, 256
  %v262 = vpop.permute.xlu0 %261
  %v263 = vlaneseq
  %v264 = vshrl.u32 %v263, 7
  %v265 = vsub.s32 2, %v264
  %v266 = vrot.slane %v241, %v265
  %268 = vbcast.lane.b32.xlu0 %v266, 256
  %v269 = vpop.permute.xlu0 %268
  %v270 = vlaneseq
  %v271 = vshrl.u32 %v270, 7
  %v272 = vsub.s32 3, %v271
  %v273 = vrot.slane %v241, %v272
  %275 = vbcast.lane.b32.xlu0 %v273, 256
  %v276 = vpop.permute.xlu0 %275
  %v277 = vlaneseq
  %v278 = vshrl.u32 %v277, 7
  %v279 = vsub.s32 4, %v278
  %v280 = vrot.slane %v241, %v279
  %282 = vbcast.lane.b32.xlu0 %v280, 256
  %v283 = vpop.permute.xlu0 %282
  %v284 = vlaneseq
  %v285 = vshrl.u32 %v284, 7
  %v286 = vsub.s32 5, %v285
  %v287 = vrot.slane %v241, %v286
  %289 = vbcast.lane.b32.xlu0 %v287, 256
  %v290 = vpop.permute.xlu0 %289
  %v291 = vlaneseq
  %v292 = vshrl.u32 %v291, 7
  %v293 = vsub.s32 6, %v292
  %v294 = vrot.slane %v241, %v293
  %296 = vbcast.lane.b32.xlu0 %v294, 256
  %v297 = vpop.permute.xlu0 %296
  %v298 = vlaneseq
  %v299 = vshrl.u32 %v298, 7
  %v300 = vsub.s32 7, %v299
  %v301 = vrot.slane %v241, %v300
  %303 = vbcast.lane.b32.xlu0 %v301, 256
  %v304 = vpop.permute.xlu0 %303
  %v305 = vlaneseq
  %v306 = vshrl.u32 %v305, 7
  %v307 = vsub.s32 0, %v306
  %v308 = vrot.slane %v242, %v307
  %310 = vbcast.lane.b32.xlu0 %v308, 256
  %v311 = vpop.permute.xlu0 %310
  %v312 = vlaneseq
  %v313 = vshrl.u32 %v312, 7
  %v314 = vsub.s32 1, %v313
  %v315 = vrot.slane %v242, %v314
  %317 = vbcast.lane.b32.xlu0 %v315, 256
  %v318 = vpop.permute.xlu0 %317
  %v319 = vlaneseq
  %v320 = vshrl.u32 %v319, 7
  %v321 = vsub.s32 2, %v320
  %v322 = vrot.slane %v242, %v321
  %324 = vbcast.lane.b32.xlu0 %v322, 256
  %v325 = vpop.permute.xlu0 %324
  %v326 = vlaneseq
  %v327 = vshrl.u32 %v326, 7
  %v328 = vsub.s32 3, %v327
  %v329 = vrot.slane %v242, %v328
  %331 = vbcast.lane.b32.xlu0 %v329, 256
  %v332 = vpop.permute.xlu0 %331
  %v333 = vlaneseq
  %v334 = vshrl.u32 %v333, 7
  %v335 = vsub.s32 4, %v334
  %v336 = vrot.slane %v242, %v335
  %338 = vbcast.lane.b32.xlu0 %v336, 256
  %v339 = vpop.permute.xlu0 %338
  %v340 = vlaneseq
  %v341 = vshrl.u32 %v340, 7
  %v342 = vsub.s32 5, %v341
  %v343 = vrot.slane %v242, %v342
  %345 = vbcast.lane.b32.xlu0 %v343, 256
  %v346 = vpop.permute.xlu0 %345
  %v347 = vlaneseq
  %v348 = vshrl.u32 %v347, 7
  %v349 = vsub.s32 6, %v348
  %v350 = vrot.slane %v242, %v349
  %352 = vbcast.lane.b32.xlu0 %v350, 256
  %v353 = vpop.permute.xlu0 %352
  %v354 = vlaneseq
  %v355 = vshrl.u32 %v354, 7
  %v356 = vsub.s32 7, %v355
  %v357 = vrot.slane %v242, %v356
  %359 = vbcast.lane.b32.xlu0 %v357, 256
  %v360 = vpop.permute.xlu0 %359
  %v361 = vlaneseq
  %v362 = vshrl.u32 %v361, 7
  %v363 = vsub.s32 0, %v362
  %v364 = vrot.slane %v243, %v363
  %366 = vbcast.lane.b32.xlu0 %v364, 256
  %v367 = vpop.permute.xlu0 %366
  %v368 = vlaneseq
  %v369 = vshrl.u32 %v368, 7
  %v370 = vsub.s32 1, %v369
  %v371 = vrot.slane %v243, %v370
  %373 = vbcast.lane.b32.xlu0 %v371, 256
  %v374 = vpop.permute.xlu0 %373
  %v375 = vlaneseq
  %v376 = vshrl.u32 %v375, 7
  %v377 = vsub.s32 2, %v376
  %v378 = vrot.slane %v243, %v377
  %380 = vbcast.lane.b32.xlu0 %v378, 256
  %v381 = vpop.permute.xlu0 %380
  %v382 = vlaneseq
  %v383 = vshrl.u32 %v382, 7
  %v384 = vsub.s32 3, %v383
  %v385 = vrot.slane %v243, %v384
  %387 = vbcast.lane.b32.xlu0 %v385, 256
  %v388 = vpop.permute.xlu0 %387
  %v389 = vlaneseq
  %v390 = vshrl.u32 %v389, 7
  %v391 = vsub.s32 4, %v390
  %v392 = vrot.slane %v243, %v391
  %394 = vbcast.lane.b32.xlu0 %v392, 256
  %v395 = vpop.permute.xlu0 %394
  %v396 = vlaneseq
  %v397 = vshrl.u32 %v396, 7
  %v398 = vsub.s32 5, %v397
  %v399 = vrot.slane %v243, %v398
  %401 = vbcast.lane.b32.xlu0 %v399, 256
  %v402 = vpop.permute.xlu0 %401
  %v403 = vlaneseq
  %v404 = vshrl.u32 %v403, 7
  %v405 = vsub.s32 6, %v404
  %v406 = vrot.slane %v243, %v405
  %408 = vbcast.lane.b32.xlu0 %v406, 256
  %v409 = vpop.permute.xlu0 %408
  %v410 = vlaneseq
  %v411 = vshrl.u32 %v410, 7
  %v412 = vsub.s32 7, %v411
  %v413 = vrot.slane %v243, %v412
  %415 = vbcast.lane.b32.xlu0 %v413, 256
  %v416 = vpop.permute.xlu0 %415
  %v417 = vlaneseq
  %v418 = vshrl.u32 %v417, 7
  %v419 = vsub.s32 0, %v418
  %v420 = vrot.slane %v244, %v419
  %422 = vbcast.lane.b32.xlu0 %v420, 256
  %v423 = vpop.permute.xlu0 %422
  %v424 = vlaneseq
  %v425 = vshrl.u32 %v424, 7
  %v426 = vsub.s32 1, %v425
  %v427 = vrot.slane %v244, %v426
  %429 = vbcast.lane.b32.xlu0 %v427, 256
  %v430 = vpop.permute.xlu0 %429
  %v431 = vlaneseq
  %v432 = vshrl.u32 %v431, 7
  %v433 = vsub.s32 2, %v432
  %v434 = vrot.slane %v244, %v433
  %436 = vbcast.lane.b32.xlu0 %v434, 256
  %v437 = vpop.permute.xlu0 %436
  %v438 = vlaneseq
  %v439 = vshrl.u32 %v438, 7
  %v440 = vsub.s32 3, %v439
  %v441 = vrot.slane %v244, %v440
  %443 = vbcast.lane.b32.xlu0 %v441, 256
  %v444 = vpop.permute.xlu0 %443
  %v445 = vlaneseq
  %v446 = vshrl.u32 %v445, 7
  %v447 = vsub.s32 4, %v446
  %v448 = vrot.slane %v244, %v447
  %450 = vbcast.lane.b32.xlu0 %v448, 256
  %v451 = vpop.permute.xlu0 %450
  %v452 = vlaneseq
  %v453 = vshrl.u32 %v452, 7
  %v454 = vsub.s32 5, %v453
  %v455 = vrot.slane %v244, %v454
  %457 = vbcast.lane.b32.xlu0 %v455, 256
  %v458 = vpop.permute.xlu0 %457
  %v459 = vlaneseq
  %v460 = vshrl.u32 %v459, 7
  %v461 = vsub.s32 6, %v460
  %v462 = vrot.slane %v244, %v461
  %464 = vbcast.lane.b32.xlu0 %v462, 256
  %v465 = vpop.permute.xlu0 %464
  %v466 = vlaneseq
  %v467 = vshrl.u32 %v466, 7
  %v468 = vsub.s32 7, %v467
  %v469 = vrot.slane %v244, %v468
  %471 = vbcast.lane.b32.xlu0 %v469, 256
  %v472 = vpop.permute.xlu0 %471
  %v473 = vlaneseq
  %v474 = vshrl.u32 %v473, 7
  %v475 = vsub.s32 0, %v474
  %v476 = vrot.slane %v245, %v475
  %478 = vbcast.lane.b32.xlu0 %v476, 256
  %v479 = vpop.permute.xlu0 %478
  %v480 = vlaneseq
  %v481 = vshrl.u32 %v480, 7
  %v482 = vsub.s32 1, %v481
  %v483 = vrot.slane %v245, %v482
  %485 = vbcast.lane.b32.xlu0 %v483, 256
  %v486 = vpop.permute.xlu0 %485
  %v487 = vlaneseq
  %v488 = vshrl.u32 %v487, 7
  %v489 = vsub.s32 2, %v488
  %v490 = vrot.slane %v245, %v489
  %492 = vbcast.lane.b32.xlu0 %v490, 256
  %v493 = vpop.permute.xlu0 %492
  %v494 = vlaneseq
  %v495 = vshrl.u32 %v494, 7
  %v496 = vsub.s32 3, %v495
  %v497 = vrot.slane %v245, %v496
  %499 = vbcast.lane.b32.xlu0 %v497, 256
  %v500 = vpop.permute.xlu0 %499
  %v501 = vlaneseq
  %v502 = vshrl.u32 %v501, 7
  %v503 = vsub.s32 4, %v502
  %v504 = vrot.slane %v245, %v503
  %506 = vbcast.lane.b32.xlu0 %v504, 256
  %v507 = vpop.permute.xlu0 %506
  %v508 = vlaneseq
  %v509 = vshrl.u32 %v508, 7
  %v510 = vsub.s32 5, %v509
  %v511 = vrot.slane %v245, %v510
  %513 = vbcast.lane.b32.xlu0 %v511, 256
  %v514 = vpop.permute.xlu0 %513
  %v515 = vlaneseq
  %v516 = vshrl.u32 %v515, 7
  %v517 = vsub.s32 6, %v516
  %v518 = vrot.slane %v245, %v517
  %520 = vbcast.lane.b32.xlu0 %v518, 256
  %v521 = vpop.permute.xlu0 %520
  %v522 = vlaneseq
  %v523 = vshrl.u32 %v522, 7
  %v524 = vsub.s32 7, %v523
  %v525 = vrot.slane %v245, %v524
  %527 = vbcast.lane.b32.xlu0 %v525, 256
  %v528 = vpop.permute.xlu0 %527
  %v529 = vlaneseq
  %v530 = vshrl.u32 %v529, 7
  %v531 = vsub.s32 0, %v530
  %v532 = vrot.slane %v246, %v531
  %534 = vbcast.lane.b32.xlu0 %v532, 256
  %v535 = vpop.permute.xlu0 %534
  %v536 = vlaneseq
  %v537 = vshrl.u32 %v536, 7
  %v538 = vsub.s32 1, %v537
  %v539 = vrot.slane %v246, %v538
  %541 = vbcast.lane.b32.xlu0 %v539, 256
  %v542 = vpop.permute.xlu0 %541
  %v543 = vlaneseq
  %v544 = vshrl.u32 %v543, 7
  %v545 = vsub.s32 2, %v544
  %v546 = vrot.slane %v246, %v545
  %548 = vbcast.lane.b32.xlu0 %v546, 256
  %v549 = vpop.permute.xlu0 %548
  %v550 = vlaneseq
  %v551 = vshrl.u32 %v550, 7
  %v552 = vsub.s32 3, %v551
  %v553 = vrot.slane %v246, %v552
  %555 = vbcast.lane.b32.xlu0 %v553, 256
  %v556 = vpop.permute.xlu0 %555
  %v557 = vlaneseq
  %v558 = vshrl.u32 %v557, 7
  %v559 = vsub.s32 4, %v558
  %v560 = vrot.slane %v246, %v559
  %562 = vbcast.lane.b32.xlu0 %v560, 256
  %v563 = vpop.permute.xlu0 %562
  %v564 = vlaneseq
  %v565 = vshrl.u32 %v564, 7
  %v566 = vsub.s32 5, %v565
  %v567 = vrot.slane %v246, %v566
  %569 = vbcast.lane.b32.xlu0 %v567, 256
  %v570 = vpop.permute.xlu0 %569
  %v571 = vlaneseq
  %v572 = vshrl.u32 %v571, 7
  %v573 = vsub.s32 6, %v572
  %v574 = vrot.slane %v246, %v573
  %576 = vbcast.lane.b32.xlu0 %v574, 256
  %v577 = vpop.permute.xlu0 %576
  %v578 = vlaneseq
  %v579 = vshrl.u32 %v578, 7
  %v580 = vsub.s32 7, %v579
  %v581 = vrot.slane %v246, %v580
  %583 = vbcast.lane.b32.xlu0 %v581, 256
  %v584 = vpop.permute.xlu0 %583
  %v585 = vlaneseq
  %v586 = vshrl.u32 %v585, 7
  %v587 = vsub.s32 0, %v586
  %v588 = vrot.slane %v247, %v587
  %590 = vbcast.lane.b32.xlu0 %v588, 256
  %v591 = vpop.permute.xlu0 %590
  %v592 = vlaneseq
  %v593 = vshrl.u32 %v592, 7
  %v594 = vsub.s32 1, %v593
  %v595 = vrot.slane %v247, %v594
  %597 = vbcast.lane.b32.xlu0 %v595, 256
  %v598 = vpop.permute.xlu0 %597
  %v599 = vlaneseq
  %v600 = vshrl.u32 %v599, 7
  %v601 = vsub.s32 2, %v600
  %v602 = vrot.slane %v247, %v601
  %604 = vbcast.lane.b32.xlu0 %v602, 256
  %v605 = vpop.permute.xlu0 %604
  %v606 = vlaneseq
  %v607 = vshrl.u32 %v606, 7
  %v608 = vsub.s32 3, %v607
  %v609 = vrot.slane %v247, %v608
  %611 = vbcast.lane.b32.xlu0 %v609, 256
  %v612 = vpop.permute.xlu0 %611
  %v613 = vlaneseq
  %v614 = vshrl.u32 %v613, 7
  %v615 = vsub.s32 4, %v614
  %v616 = vrot.slane %v247, %v615
  %618 = vbcast.lane.b32.xlu0 %v616, 256
  %v619 = vpop.permute.xlu0 %618
  %v620 = vlaneseq
  %v621 = vshrl.u32 %v620, 7
  %v622 = vsub.s32 5, %v621
  %v623 = vrot.slane %v247, %v622
  %625 = vbcast.lane.b32.xlu0 %v623, 256
  %v626 = vpop.permute.xlu0 %625
  %v627 = vlaneseq
  %v628 = vshrl.u32 %v627, 7
  %v629 = vsub.s32 6, %v628
  %v630 = vrot.slane %v247, %v629
  %632 = vbcast.lane.b32.xlu0 %v630, 256
  %v633 = vpop.permute.xlu0 %632
  %v634 = vlaneseq
  %v635 = vshrl.u32 %v634, 7
  %v636 = vsub.s32 7, %v635
  %v637 = vrot.slane %v247, %v636
  %639 = vbcast.lane.b32.xlu0 %v637, 256
  %v640 = vpop.permute.xlu0 %639
  %v641 = vlaneseq
  %v642 = vshrl.u32 %v641, 7
  %v643 = vsub.s32 0, %v642
  %v644 = vrot.slane %v248, %v643
  %646 = vbcast.lane.b32.xlu0 %v644, 256
  %v647 = vpop.permute.xlu0 %646
  %v648 = vlaneseq
  %v649 = vshrl.u32 %v648, 7
  %v650 = vsub.s32 1, %v649
  %v651 = vrot.slane %v248, %v650
  %653 = vbcast.lane.b32.xlu0 %v651, 256
  %v654 = vpop.permute.xlu0 %653
  %v655 = vlaneseq
  %v656 = vshrl.u32 %v655, 7
  %v657 = vsub.s32 2, %v656
  %v658 = vrot.slane %v248, %v657
  %660 = vbcast.lane.b32.xlu0 %v658, 256
  %v661 = vpop.permute.xlu0 %660
  %v662 = vlaneseq
  %v663 = vshrl.u32 %v662, 7
  %v664 = vsub.s32 3, %v663
  %v665 = vrot.slane %v248, %v664
  %667 = vbcast.lane.b32.xlu0 %v665, 256
  %v668 = vpop.permute.xlu0 %667
  %v669 = vlaneseq
  %v670 = vshrl.u32 %v669, 7
  %v671 = vsub.s32 4, %v670
  %v672 = vrot.slane %v248, %v671
  %674 = vbcast.lane.b32.xlu0 %v672, 256
  %v675 = vpop.permute.xlu0 %674
  %v676 = vlaneseq
  %v677 = vshrl.u32 %v676, 7
  %v678 = vsub.s32 5, %v677
  %v679 = vrot.slane %v248, %v678
  %681 = vbcast.lane.b32.xlu0 %v679, 256
  %v682 = vpop.permute.xlu0 %681
  %v683 = vlaneseq
  %v684 = vshrl.u32 %v683, 7
  %v685 = vsub.s32 6, %v684
  %v686 = vrot.slane %v248, %v685
  %688 = vbcast.lane.b32.xlu0 %v686, 256
  %v689 = vpop.permute.xlu0 %688
  %v690 = vlaneseq
  %v691 = vshrl.u32 %v690, 7
  %v692 = vsub.s32 7, %v691
  %v693 = vrot.slane %v248, %v692
  %695 = vbcast.lane.b32.xlu0 %v693, 256
  %v696 = vpop.permute.xlu0 %695
  %v697 = vmul.f32 %v255, %v22
  %v698 = vmul.f32 %v262, %v23
  %v699 = vmul.f32 %v269, %v24
  %v700 = vmul.f32 %v276, %v25
  %v701 = vmul.f32 %v283, %v26
  %v702 = vmul.f32 %v290, %v27
  %v703 = vmul.f32 %v297, %v28
  %v704 = vmul.f32 %v304, %v29
  %v705 = vmul.f32 %v311, %v30
  %v706 = vmul.f32 %v318, %v31
  %v707 = vmul.f32 %v325, %v32
  %v708 = vmul.f32 %v332, %v33
  %v709 = vmul.f32 %v339, %v34
  %v710 = vmul.f32 %v346, %v35
  %v711 = vmul.f32 %v353, %v36
  %v712 = vmul.f32 %v360, %v37
  %v713 = vmul.f32 %v367, %v38
  %v714 = vmul.f32 %v374, %v39
  %v715 = vmul.f32 %v381, %v40
  %v716 = vmul.f32 %v388, %v41
  %v717 = vmul.f32 %v395, %v42
  %v718 = vmul.f32 %v402, %v43
  %v719 = vmul.f32 %v409, %v44
  %v720 = vmul.f32 %v416, %v45
  %v721 = vmul.f32 %v423, %v46
  %v722 = vmul.f32 %v430, %v47
  %v723 = vmul.f32 %v437, %v48
  %v724 = vmul.f32 %v444, %v49
  %v725 = vmul.f32 %v451, %v50
  %v726 = vmul.f32 %v458, %v51
  %v727 = vmul.f32 %v465, %v52
  %v728 = vmul.f32 %v472, %v53
  %v729 = vmul.f32 %v479, %v54
  %v730 = vmul.f32 %v486, %v55
  %v731 = vmul.f32 %v493, %v56
  %v732 = vmul.f32 %v500, %v57
  %v733 = vmul.f32 %v507, %v58
  %v734 = vmul.f32 %v514, %v59
  %v735 = vmul.f32 %v521, %v60
  %v736 = vmul.f32 %v528, %v61
  %v737 = vmul.f32 %v535, %v62
  %v738 = vmul.f32 %v542, %v63
  %v739 = vmul.f32 %v549, %v64
  %v740 = vmul.f32 %v556, %v65
  %v741 = vmul.f32 %v563, %v66
  %v742 = vmul.f32 %v570, %v67
  %v743 = vmul.f32 %v577, %v68
  %v744 = vmul.f32 %v584, %v69
  %v745 = vmul.f32 %v591, %v70
  %v746 = vmul.f32 %v598, %v71
  %v747 = vmul.f32 %v605, %v72
  %v748 = vmul.f32 %v612, %v73
  %v749 = vmul.f32 %v619, %v74
  %v750 = vmul.f32 %v626, %v75
  %v751 = vmul.f32 %v633, %v76
  %v752 = vmul.f32 %v640, %v77
  %v753 = vmul.f32 %v647, %v78
  %v754 = vmul.f32 %v654, %v79
  %v755 = vmul.f32 %v661, %v80
  %v756 = vmul.f32 %v668, %v81
  %v757 = vmul.f32 %v675, %v82
  %v758 = vmul.f32 %v682, %v83
  %v759 = vmul.f32 %v689, %v84
  %v760 = vmul.f32 %v696, %v85
  %v761 = vsel %vm136, %v697, 0.0
  %v762 = vrot.slane %v761, 4
  %v763 = vadd.f32 %v761, %v762
  %v764 = vrot.slane %v763, 2
  %v765 = vadd.f32 %v763, %v764
  %v766 = vrot.slane %v765, 1
  %v767 = vadd.f32 %v765, %v766
  %v768 = vsel %vm136, %v698, 0.0
  %v769 = vrot.slane %v768, 4
  %v770 = vadd.f32 %v768, %v769
  %v771 = vrot.slane %v770, 2
  %v772 = vadd.f32 %v770, %v771
  %v773 = vrot.slane %v772, 1
  %v774 = vadd.f32 %v772, %v773
  %v775 = vsel %vm136, %v699, 0.0
  %v776 = vrot.slane %v775, 4
  %v777 = vadd.f32 %v775, %v776
  %v778 = vrot.slane %v777, 2
  %v779 = vadd.f32 %v777, %v778
  %v780 = vrot.slane %v779, 1
  %v781 = vadd.f32 %v779, %v780
  %v782 = vsel %vm136, %v700, 0.0
  %v783 = vrot.slane %v782, 4
  %v784 = vadd.f32 %v782, %v783
  %v785 = vrot.slane %v784, 2
  %v786 = vadd.f32 %v784, %v785
  %v787 = vrot.slane %v786, 1
  %v788 = vadd.f32 %v786, %v787
  %v789 = vsel %vm136, %v701, 0.0
  %v790 = vrot.slane %v789, 4
  %v791 = vadd.f32 %v789, %v790
  %v792 = vrot.slane %v791, 2
  %v793 = vadd.f32 %v791, %v792
  %v794 = vrot.slane %v793, 1
  %v795 = vadd.f32 %v793, %v794
  %v796 = vsel %vm136, %v702, 0.0
  %v797 = vrot.slane %v796, 4
  %v798 = vadd.f32 %v796, %v797
  %v799 = vrot.slane %v798, 2
  %v800 = vadd.f32 %v798, %v799
  %v801 = vrot.slane %v800, 1
  %v802 = vadd.f32 %v800, %v801
  %v803 = vsel %vm136, %v703, 0.0
  %v804 = vrot.slane %v803, 4
  %v805 = vadd.f32 %v803, %v804
  %v806 = vrot.slane %v805, 2
  %v807 = vadd.f32 %v805, %v806
  %v808 = vrot.slane %v807, 1
  %v809 = vadd.f32 %v807, %v808
  %v810 = vsel %vm136, %v704, 0.0
  %v811 = vrot.slane %v810, 4
  %v812 = vadd.f32 %v810, %v811
  %v813 = vrot.slane %v812, 2
  %v814 = vadd.f32 %v812, %v813
  %v815 = vrot.slane %v814, 1
  %v816 = vadd.f32 %v814, %v815
  %v817 = vsel %vm136, %v705, 0.0
  %v818 = vrot.slane %v817, 4
  %v819 = vadd.f32 %v817, %v818
  %v820 = vrot.slane %v819, 2
  %v821 = vadd.f32 %v819, %v820
  %v822 = vrot.slane %v821, 1
  %v823 = vadd.f32 %v821, %v822
  %v824 = vsel %vm136, %v706, 0.0
  %v825 = vrot.slane %v824, 4
  %v826 = vadd.f32 %v824, %v825
  %v827 = vrot.slane %v826, 2
  %v828 = vadd.f32 %v826, %v827
  %v829 = vrot.slane %v828, 1
  %v830 = vadd.f32 %v828, %v829
  %v831 = vsel %vm136, %v707, 0.0
  %v832 = vrot.slane %v831, 4
  %v833 = vadd.f32 %v831, %v832
  %v834 = vrot.slane %v833, 2
  %v835 = vadd.f32 %v833, %v834
  %v836 = vrot.slane %v835, 1
  %v837 = vadd.f32 %v835, %v836
  %v838 = vsel %vm136, %v708, 0.0
  %v839 = vrot.slane %v838, 4
  %v840 = vadd.f32 %v838, %v839
  %v841 = vrot.slane %v840, 2
  %v842 = vadd.f32 %v840, %v841
  %v843 = vrot.slane %v842, 1
  %v844 = vadd.f32 %v842, %v843
  %v845 = vsel %vm136, %v709, 0.0
  %v846 = vrot.slane %v845, 4
  %v847 = vadd.f32 %v845, %v846
  %v848 = vrot.slane %v847, 2
  %v849 = vadd.f32 %v847, %v848
  %v850 = vrot.slane %v849, 1
  %v851 = vadd.f32 %v849, %v850
  %v852 = vsel %vm136, %v710, 0.0
  %v853 = vrot.slane %v852, 4
  %v854 = vadd.f32 %v852, %v853
  %v855 = vrot.slane %v854, 2
  %v856 = vadd.f32 %v854, %v855
  %v857 = vrot.slane %v856, 1
  %v858 = vadd.f32 %v856, %v857
  %v859 = vsel %vm136, %v711, 0.0
  %v860 = vrot.slane %v859, 4
  %v861 = vadd.f32 %v859, %v860
  %v862 = vrot.slane %v861, 2
  %v863 = vadd.f32 %v861, %v862
  %v864 = vrot.slane %v863, 1
  %v865 = vadd.f32 %v863, %v864
  %v866 = vsel %vm136, %v712, 0.0
  %v867 = vrot.slane %v866, 4
  %v868 = vadd.f32 %v866, %v867
  %v869 = vrot.slane %v868, 2
  %v870 = vadd.f32 %v868, %v869
  %v871 = vrot.slane %v870, 1
  %v872 = vadd.f32 %v870, %v871
  %v873 = vsel %vm136, %v713, 0.0
  %v874 = vrot.slane %v873, 4
  %v875 = vadd.f32 %v873, %v874
  %v876 = vrot.slane %v875, 2
  %v877 = vadd.f32 %v875, %v876
  %v878 = vrot.slane %v877, 1
  %v879 = vadd.f32 %v877, %v878
  %v880 = vsel %vm136, %v714, 0.0
  %v881 = vrot.slane %v880, 4
  %v882 = vadd.f32 %v880, %v881
  %v883 = vrot.slane %v882, 2
  %v884 = vadd.f32 %v882, %v883
  %v885 = vrot.slane %v884, 1
  %v886 = vadd.f32 %v884, %v885
  %v887 = vsel %vm136, %v715, 0.0
  %v888 = vrot.slane %v887, 4
  %v889 = vadd.f32 %v887, %v888
  %v890 = vrot.slane %v889, 2
  %v891 = vadd.f32 %v889, %v890
  %v892 = vrot.slane %v891, 1
  %v893 = vadd.f32 %v891, %v892
  %v894 = vsel %vm136, %v716, 0.0
  %v895 = vrot.slane %v894, 4
  %v896 = vadd.f32 %v894, %v895
  %v897 = vrot.slane %v896, 2
  %v898 = vadd.f32 %v896, %v897
  %v899 = vrot.slane %v898, 1
  %v900 = vadd.f32 %v898, %v899
  %v901 = vsel %vm136, %v717, 0.0
  %v902 = vrot.slane %v901, 4
  %v903 = vadd.f32 %v901, %v902
  %v904 = vrot.slane %v903, 2
  %v905 = vadd.f32 %v903, %v904
  %v906 = vrot.slane %v905, 1
  %v907 = vadd.f32 %v905, %v906
  %v908 = vsel %vm136, %v718, 0.0
  %v909 = vrot.slane %v908, 4
  %v910 = vadd.f32 %v908, %v909
  %v911 = vrot.slane %v910, 2
  %v912 = vadd.f32 %v910, %v911
  %v913 = vrot.slane %v912, 1
  %v914 = vadd.f32 %v912, %v913
  %v915 = vsel %vm136, %v719, 0.0
  %v916 = vrot.slane %v915, 4
  %v917 = vadd.f32 %v915, %v916
  %v918 = vrot.slane %v917, 2
  %v919 = vadd.f32 %v917, %v918
  %v920 = vrot.slane %v919, 1
  %v921 = vadd.f32 %v919, %v920
  %v922 = vsel %vm136, %v720, 0.0
  %v923 = vrot.slane %v922, 4
  %v924 = vadd.f32 %v922, %v923
  %v925 = vrot.slane %v924, 2
  %v926 = vadd.f32 %v924, %v925
  %v927 = vrot.slane %v926, 1
  %v928 = vadd.f32 %v926, %v927
  %v929 = vsel %vm136, %v721, 0.0
  %v930 = vrot.slane %v929, 4
  %v931 = vadd.f32 %v929, %v930
  %v932 = vrot.slane %v931, 2
  %v933 = vadd.f32 %v931, %v932
  %v934 = vrot.slane %v933, 1
  %v935 = vadd.f32 %v933, %v934
  %v936 = vsel %vm136, %v722, 0.0
  %v937 = vrot.slane %v936, 4
  %v938 = vadd.f32 %v936, %v937
  %v939 = vrot.slane %v938, 2
  %v940 = vadd.f32 %v938, %v939
  %v941 = vrot.slane %v940, 1
  %v942 = vadd.f32 %v940, %v941
  %v943 = vsel %vm136, %v723, 0.0
  %v944 = vrot.slane %v943, 4
  %v945 = vadd.f32 %v943, %v944
  %v946 = vrot.slane %v945, 2
  %v947 = vadd.f32 %v945, %v946
  %v948 = vrot.slane %v947, 1
  %v949 = vadd.f32 %v947, %v948
  %v950 = vsel %vm136, %v724, 0.0
  %v951 = vrot.slane %v950, 4
  %v952 = vadd.f32 %v950, %v951
  %v953 = vrot.slane %v952, 2
  %v954 = vadd.f32 %v952, %v953
  %v955 = vrot.slane %v954, 1
  %v956 = vadd.f32 %v954, %v955
  %v957 = vsel %vm136, %v725, 0.0
  %v958 = vrot.slane %v957, 4
  %v959 = vadd.f32 %v957, %v958
  %v960 = vrot.slane %v959, 2
  %v961 = vadd.f32 %v959, %v960
  %v962 = vrot.slane %v961, 1
  %v963 = vadd.f32 %v961, %v962
  %v964 = vsel %vm136, %v726, 0.0
  %v965 = vrot.slane %v964, 4
  %v966 = vadd.f32 %v964, %v965
  %v967 = vrot.slane %v966, 2
  %v968 = vadd.f32 %v966, %v967
  %v969 = vrot.slane %v968, 1
  %v970 = vadd.f32 %v968, %v969
  %v971 = vsel %vm136, %v727, 0.0
  %v972 = vrot.slane %v971, 4
  %v973 = vadd.f32 %v971, %v972
  %v974 = vrot.slane %v973, 2
  %v975 = vadd.f32 %v973, %v974
  %v976 = vrot.slane %v975, 1
  %v977 = vadd.f32 %v975, %v976
  %v978 = vsel %vm136, %v728, 0.0
  %v979 = vrot.slane %v978, 4
  %v980 = vadd.f32 %v978, %v979
  %v981 = vrot.slane %v980, 2
  %v982 = vadd.f32 %v980, %v981
  %v983 = vrot.slane %v982, 1
  %v984 = vadd.f32 %v982, %v983
  %v985 = vsel %vm136, %v729, 0.0
  %v986 = vrot.slane %v985, 4
  %v987 = vadd.f32 %v985, %v986
  %v988 = vrot.slane %v987, 2
  %v989 = vadd.f32 %v987, %v988
  %v990 = vrot.slane %v989, 1
  %v991 = vadd.f32 %v989, %v990
  %v992 = vsel %vm136, %v730, 0.0
  %v993 = vrot.slane %v992, 4
  %v994 = vadd.f32 %v992, %v993
  %v995 = vrot.slane %v994, 2
  %v996 = vadd.f32 %v994, %v995
  %v997 = vrot.slane %v996, 1
  %v998 = vadd.f32 %v996, %v997
  %v999 = vsel %vm136, %v731, 0.0
  %v1000 = vrot.slane %v999, 4
  %v1001 = vadd.f32 %v999, %v1000
  %v1002 = vrot.slane %v1001, 2
  %v1003 = vadd.f32 %v1001, %v1002
  %v1004 = vrot.slane %v1003, 1
  %v1005 = vadd.f32 %v1003, %v1004
  %v1006 = vsel %vm136, %v732, 0.0
  %v1007 = vrot.slane %v1006, 4
  %v1008 = vadd.f32 %v1006, %v1007
  %v1009 = vrot.slane %v1008, 2
  %v1010 = vadd.f32 %v1008, %v1009
  %v1011 = vrot.slane %v1010, 1
  %v1012 = vadd.f32 %v1010, %v1011
  %v1013 = vsel %vm136, %v733, 0.0
  %v1014 = vrot.slane %v1013, 4
  %v1015 = vadd.f32 %v1013, %v1014
  %v1016 = vrot.slane %v1015, 2
  %v1017 = vadd.f32 %v1015, %v1016
  %v1018 = vrot.slane %v1017, 1
  %v1019 = vadd.f32 %v1017, %v1018
  %v1020 = vsel %vm136, %v734, 0.0
  %v1021 = vrot.slane %v1020, 4
  %v1022 = vadd.f32 %v1020, %v1021
  %v1023 = vrot.slane %v1022, 2
  %v1024 = vadd.f32 %v1022, %v1023
  %v1025 = vrot.slane %v1024, 1
  %v1026 = vadd.f32 %v1024, %v1025
  %v1027 = vsel %vm136, %v735, 0.0
  %v1028 = vrot.slane %v1027, 4
  %v1029 = vadd.f32 %v1027, %v1028
  %v1030 = vrot.slane %v1029, 2
  %v1031 = vadd.f32 %v1029, %v1030
  %v1032 = vrot.slane %v1031, 1
  %v1033 = vadd.f32 %v1031, %v1032
  %v1034 = vsel %vm136, %v736, 0.0
  %v1035 = vrot.slane %v1034, 4
  %v1036 = vadd.f32 %v1034, %v1035
  %v1037 = vrot.slane %v1036, 2
  %v1038 = vadd.f32 %v1036, %v1037
  %v1039 = vrot.slane %v1038, 1
  %v1040 = vadd.f32 %v1038, %v1039
  %v1041 = vsel %vm136, %v737, 0.0
  %v1042 = vrot.slane %v1041, 4
  %v1043 = vadd.f32 %v1041, %v1042
  %v1044 = vrot.slane %v1043, 2
  %v1045 = vadd.f32 %v1043, %v1044
  %v1046 = vrot.slane %v1045, 1
  %v1047 = vadd.f32 %v1045, %v1046
  %v1048 = vsel %vm136, %v738, 0.0
  %v1049 = vrot.slane %v1048, 4
  %v1050 = vadd.f32 %v1048, %v1049
  %v1051 = vrot.slane %v1050, 2
  %v1052 = vadd.f32 %v1050, %v1051
  %v1053 = vrot.slane %v1052, 1
  %v1054 = vadd.f32 %v1052, %v1053
  %v1055 = vsel %vm136, %v739, 0.0
  %v1056 = vrot.slane %v1055, 4
  %v1057 = vadd.f32 %v1055, %v1056
  %v1058 = vrot.slane %v1057, 2
  %v1059 = vadd.f32 %v1057, %v1058
  %v1060 = vrot.slane %v1059, 1
  %v1061 = vadd.f32 %v1059, %v1060
  %v1062 = vsel %vm136, %v740, 0.0
  %v1063 = vrot.slane %v1062, 4
  %v1064 = vadd.f32 %v1062, %v1063
  %v1065 = vrot.slane %v1064, 2
  %v1066 = vadd.f32 %v1064, %v1065
  %v1067 = vrot.slane %v1066, 1
  %v1068 = vadd.f32 %v1066, %v1067
  %v1069 = vsel %vm136, %v741, 0.0
  %v1070 = vrot.slane %v1069, 4
  %v1071 = vadd.f32 %v1069, %v1070
  %v1072 = vrot.slane %v1071, 2
  %v1073 = vadd.f32 %v1071, %v1072
  %v1074 = vrot.slane %v1073, 1
  %v1075 = vadd.f32 %v1073, %v1074
  %v1076 = vsel %vm136, %v742, 0.0
  %v1077 = vrot.slane %v1076, 4
  %v1078 = vadd.f32 %v1076, %v1077
  %v1079 = vrot.slane %v1078, 2
  %v1080 = vadd.f32 %v1078, %v1079
  %v1081 = vrot.slane %v1080, 1
  %v1082 = vadd.f32 %v1080, %v1081
  %v1083 = vsel %vm136, %v743, 0.0
  %v1084 = vrot.slane %v1083, 4
  %v1085 = vadd.f32 %v1083, %v1084
  %v1086 = vrot.slane %v1085, 2
  %v1087 = vadd.f32 %v1085, %v1086
  %v1088 = vrot.slane %v1087, 1
  %v1089 = vadd.f32 %v1087, %v1088
  %v1090 = vsel %vm136, %v744, 0.0
  %v1091 = vrot.slane %v1090, 4
  %v1092 = vadd.f32 %v1090, %v1091
  %v1093 = vrot.slane %v1092, 2
  %v1094 = vadd.f32 %v1092, %v1093
  %v1095 = vrot.slane %v1094, 1
  %v1096 = vadd.f32 %v1094, %v1095
  %v1097 = vsel %vm136, %v745, 0.0
  %v1098 = vrot.slane %v1097, 4
  %v1099 = vadd.f32 %v1097, %v1098
  %v1100 = vrot.slane %v1099, 2
  %v1101 = vadd.f32 %v1099, %v1100
  %v1102 = vrot.slane %v1101, 1
  %v1103 = vadd.f32 %v1101, %v1102
  %v1104 = vsel %vm136, %v746, 0.0
  %v1105 = vrot.slane %v1104, 4
  %v1106 = vadd.f32 %v1104, %v1105
  %v1107 = vrot.slane %v1106, 2
  %v1108 = vadd.f32 %v1106, %v1107
  %v1109 = vrot.slane %v1108, 1
  %v1110 = vadd.f32 %v1108, %v1109
  %v1111 = vsel %vm136, %v747, 0.0
  %v1112 = vrot.slane %v1111, 4
  %v1113 = vadd.f32 %v1111, %v1112
  %v1114 = vrot.slane %v1113, 2
  %v1115 = vadd.f32 %v1113, %v1114
  %v1116 = vrot.slane %v1115, 1
  %v1117 = vadd.f32 %v1115, %v1116
  %v1118 = vsel %vm136, %v748, 0.0
  %v1119 = vrot.slane %v1118, 4
  %v1120 = vadd.f32 %v1118, %v1119
  %v1121 = vrot.slane %v1120, 2
  %v1122 = vadd.f32 %v1120, %v1121
  %v1123 = vrot.slane %v1122, 1
  %v1124 = vadd.f32 %v1122, %v1123
  %v1125 = vsel %vm136, %v749, 0.0
  %v1126 = vrot.slane %v1125, 4
  %v1127 = vadd.f32 %v1125, %v1126
  %v1128 = vrot.slane %v1127, 2
  %v1129 = vadd.f32 %v1127, %v1128
  %v1130 = vrot.slane %v1129, 1
  %v1131 = vadd.f32 %v1129, %v1130
  %v1132 = vsel %vm136, %v750, 0.0
  %v1133 = vrot.slane %v1132, 4
  %v1134 = vadd.f32 %v1132, %v1133
  %v1135 = vrot.slane %v1134, 2
  %v1136 = vadd.f32 %v1134, %v1135
  %v1137 = vrot.slane %v1136, 1
  %v1138 = vadd.f32 %v1136, %v1137
  %v1139 = vsel %vm136, %v751, 0.0
  %v1140 = vrot.slane %v1139, 4
  %v1141 = vadd.f32 %v1139, %v1140
  %v1142 = vrot.slane %v1141, 2
  %v1143 = vadd.f32 %v1141, %v1142
  %v1144 = vrot.slane %v1143, 1
  %v1145 = vadd.f32 %v1143, %v1144
  %v1146 = vsel %vm136, %v752, 0.0
  %v1147 = vrot.slane %v1146, 4
  %v1148 = vadd.f32 %v1146, %v1147
  %v1149 = vrot.slane %v1148, 2
  %v1150 = vadd.f32 %v1148, %v1149
  %v1151 = vrot.slane %v1150, 1
  %v1152 = vadd.f32 %v1150, %v1151
  %v1153 = vsel %vm136, %v753, 0.0
  %v1154 = vrot.slane %v1153, 4
  %v1155 = vadd.f32 %v1153, %v1154
  %v1156 = vrot.slane %v1155, 2
  %v1157 = vadd.f32 %v1155, %v1156
  %v1158 = vrot.slane %v1157, 1
  %v1159 = vadd.f32 %v1157, %v1158
  %v1160 = vsel %vm136, %v754, 0.0
  %v1161 = vrot.slane %v1160, 4
  %v1162 = vadd.f32 %v1160, %v1161
  %v1163 = vrot.slane %v1162, 2
  %v1164 = vadd.f32 %v1162, %v1163
  %v1165 = vrot.slane %v1164, 1
  %v1166 = vadd.f32 %v1164, %v1165
  %v1167 = vsel %vm136, %v755, 0.0
  %v1168 = vrot.slane %v1167, 4
  %v1169 = vadd.f32 %v1167, %v1168
  %v1170 = vrot.slane %v1169, 2
  %v1171 = vadd.f32 %v1169, %v1170
  %v1172 = vrot.slane %v1171, 1
  %v1173 = vadd.f32 %v1171, %v1172
  %v1174 = vsel %vm136, %v756, 0.0
  %v1175 = vrot.slane %v1174, 4
  %v1176 = vadd.f32 %v1174, %v1175
  %v1177 = vrot.slane %v1176, 2
  %v1178 = vadd.f32 %v1176, %v1177
  %v1179 = vrot.slane %v1178, 1
  %v1180 = vadd.f32 %v1178, %v1179
  %v1181 = vsel %vm136, %v757, 0.0
  %v1182 = vrot.slane %v1181, 4
  %v1183 = vadd.f32 %v1181, %v1182
  %v1184 = vrot.slane %v1183, 2
  %v1185 = vadd.f32 %v1183, %v1184
  %v1186 = vrot.slane %v1185, 1
  %v1187 = vadd.f32 %v1185, %v1186
  %v1188 = vsel %vm136, %v758, 0.0
  %v1189 = vrot.slane %v1188, 4
  %v1190 = vadd.f32 %v1188, %v1189
  %v1191 = vrot.slane %v1190, 2
  %v1192 = vadd.f32 %v1190, %v1191
  %v1193 = vrot.slane %v1192, 1
  %v1194 = vadd.f32 %v1192, %v1193
  %v1195 = vsel %vm136, %v759, 0.0
  %v1196 = vrot.slane %v1195, 4
  %v1197 = vadd.f32 %v1195, %v1196
  %v1198 = vrot.slane %v1197, 2
  %v1199 = vadd.f32 %v1197, %v1198
  %v1200 = vrot.slane %v1199, 1
  %v1201 = vadd.f32 %v1199, %v1200
  %v1202 = vsel %vm136, %v760, 0.0
  %v1203 = vrot.slane %v1202, 4
  %v1204 = vadd.f32 %v1202, %v1203
  %v1205 = vrot.slane %v1204, 2
  %v1206 = vadd.f32 %v1204, %v1205
  %v1207 = vrot.slane %v1206, 1
  %v1208 = vadd.f32 %v1206, %v1207
  %vm1273 = vcmask 1041409
  %v1274 = vsel %vm1273, %v774, %v767
  %vm1275 = vcmask 1042434
  %v1276 = vsel %vm1275, %v781, %v1274
  %vm1277 = vcmask 1043459
  %v1278 = vsel %vm1277, %v788, %v1276
  %vm1279 = vcmask 1044484
  %v1280 = vsel %vm1279, %v795, %v1278
  %vm1281 = vcmask 1045509
  %v1282 = vsel %vm1281, %v802, %v1280
  %vm1283 = vcmask 1046534
  %v1284 = vsel %vm1283, %v809, %v1282
  %vm1285 = vcmask 1047559
  %v1286 = vsel %vm1285, %v816, %v1284
  %v1287 = vsel %vm1273, %v830, %v823
  %v1288 = vsel %vm1275, %v837, %v1287
  %v1289 = vsel %vm1277, %v844, %v1288
  %v1290 = vsel %vm1279, %v851, %v1289
  %v1291 = vsel %vm1281, %v858, %v1290
  %v1292 = vsel %vm1283, %v865, %v1291
  %v1293 = vsel %vm1285, %v872, %v1292
  %v1294 = vsel %vm1273, %v886, %v879
  %v1295 = vsel %vm1275, %v893, %v1294
  %v1296 = vsel %vm1277, %v900, %v1295
  %v1297 = vsel %vm1279, %v907, %v1296
  %v1298 = vsel %vm1281, %v914, %v1297
  %v1299 = vsel %vm1283, %v921, %v1298
  %v1300 = vsel %vm1285, %v928, %v1299
  %v1301 = vsel %vm1273, %v942, %v935
  %v1302 = vsel %vm1275, %v949, %v1301
  %v1303 = vsel %vm1277, %v956, %v1302
  %v1304 = vsel %vm1279, %v963, %v1303
  %v1305 = vsel %vm1281, %v970, %v1304
  %v1306 = vsel %vm1283, %v977, %v1305
  %v1307 = vsel %vm1285, %v984, %v1306
  %v1308 = vsel %vm1273, %v998, %v991
  %v1309 = vsel %vm1275, %v1005, %v1308
  %v1310 = vsel %vm1277, %v1012, %v1309
  %v1311 = vsel %vm1279, %v1019, %v1310
  %v1312 = vsel %vm1281, %v1026, %v1311
  %v1313 = vsel %vm1283, %v1033, %v1312
  %v1314 = vsel %vm1285, %v1040, %v1313
  %v1315 = vsel %vm1273, %v1054, %v1047
  %v1316 = vsel %vm1275, %v1061, %v1315
  %v1317 = vsel %vm1277, %v1068, %v1316
  %v1318 = vsel %vm1279, %v1075, %v1317
  %v1319 = vsel %vm1281, %v1082, %v1318
  %v1320 = vsel %vm1283, %v1089, %v1319
  %v1321 = vsel %vm1285, %v1096, %v1320
  %v1322 = vsel %vm1273, %v1110, %v1103
  %v1323 = vsel %vm1275, %v1117, %v1322
  %v1324 = vsel %vm1277, %v1124, %v1323
  %v1325 = vsel %vm1279, %v1131, %v1324
  %v1326 = vsel %vm1281, %v1138, %v1325
  %v1327 = vsel %vm1283, %v1145, %v1326
  %v1328 = vsel %vm1285, %v1152, %v1327
  %v1329 = vsel %vm1273, %v1166, %v1159
  %v1330 = vsel %vm1275, %v1173, %v1329
  %v1331 = vsel %vm1277, %v1180, %v1330
  %v1332 = vsel %vm1279, %v1187, %v1331
  %v1333 = vsel %vm1281, %v1194, %v1332
  %v1334 = vsel %vm1283, %v1201, %v1333
  %v1335 = vsel %vm1285, %v1208, %v1334
  %1344 = vst.msk [vmem:[%s3] sm:$0xff] %vm136, %v1286
  %1345 = vst.msk [vmem:[%s3 + $0x8] sm:$0xff] %vm136, %v1293
  %1346 = vst.msk [vmem:[%s3 + $0x10] sm:$0xff] %vm136, %v1300
  %1347 = vst.msk [vmem:[%s3 + $0x18] sm:$0xff] %vm136, %v1307
  %1348 = vst.msk [vmem:[%s3 + $0x20] sm:$0xff] %vm136, %v1314
  %1349 = vst.msk [vmem:[%s3 + $0x28] sm:$0xff] %vm136, %v1321
  %1350 = vst.msk [vmem:[%s3 + $0x30] sm:$0xff] %vm136, %v1328
  %1351 = vst.msk [vmem:[%s3 + $0x38] sm:$0xff] %vm136, %v1335
  // Predicated region
  $region14: #{swin_block_forward.4} parent=0 // pred_check
    _
  $region15: #{swin_block_forward.4} parent=0 // pred_check_branch
    %1353 = sbr.rel (0) target = $region17
  $region16: #{swin_block_forward.4} parent=0 // pred_region
    _
  $region17: #{swin_block_forward.4} parent=0 // pred_fallthru
    _
  // Predicated region
  $region18: #{swin_block_forward.4} parent=0 // pred_check
    _
  $region19: #{swin_block_forward.4} parent=0 // pred_check_branch
    %1355 = sbr.rel (0) target = $region21
  $region20: #{swin_block_forward.4} parent=0 // pred_region
    _
  $region21: #{swin_block_forward.4} parent=0 // pred_fallthru
    _

</llo_original>
